<compile_context>
chip_gen: v7x
topology: tpu7x:2x2x1
jax: 0.10.0
libtpu: 0.0.40
codegen_flags: <defaults>
</compile_context>

<pallas_src>
import functools

import jax
import jax.numpy as jnp
from jax.experimental import pallas as pl
from jax.experimental.pallas import tpu as pltpu


def _attention_kernel(x_ref, w_in_ref, w_out_ref, o_ref,
                      q_s, k_s, v_s, g_s, *, heads, dim_head, seq_len, kv_block):
    m, dim = x_ref.shape          # m = bt * seq_len rows (batch-major, seq-minor)
    n = seq_len
    bt = m // n                   # batches handled by this grid step
    d = dim_head
    di = heads * d
    cdt = x_ref.dtype             # MXU / elementwise compute dtype (bf16 fast path)
    scale = d ** -0.5

    # ---- fused qkv + gate projections: one big-M, lane-dense-N GEMM ----------
    proj = jnp.dot(x_ref[...], w_in_ref[...],
                   preferred_element_type=jnp.float32)          # (m, 4*di) f32 acc

    # SiLU gates: sigmoid in f32 once, then a single cast to the compute dtype.
    g = proj[:, 3 * di:]                                        # 128-aligned slice
    gates = (g * jax.nn.sigmoid(g)).astype(cdt)                 # (m, di)

    # ---- head-major relayout via compute-dtype VMEM scratch -------------------
    # (heads, bt, n, d) scratch realises 'b n (h d) -> (h b) n d' with plain
    # leading-axis stores (no in-register transposes).  The 1/sqrt(d) scale is
    # folded into q here: O(m*d) multiplies instead of O(n*n) on the scores.
    for h in range(heads):
        q_s[h] = (proj[:, h * d:(h + 1) * d] * scale).reshape(bt, n, d).astype(cdt)
        k_s[h] = proj[:, di + h * d:di + (h + 1) * d].reshape(bt, n, d).astype(cdt)
        v_s[h] = proj[:, 2 * di + h * d:2 * di + (h + 1) * d].reshape(bt, n, d).astype(cdt)
    hb = heads * bt
    q = q_s[...].reshape(hb, n, d)
    k = k_s[...].reshape(hb, n, d)
    v = v_s[...].reshape(hb, n, d)

    # ---- kv-tiled online softmax (flash-style), normalisation deferred -------
    # Score blocks are (hb, n, kv_block) so the full (n, n) f32 slab never
    # materialises; the softmax denominator is applied once to the (hb, n, d)
    # accumulator after the PV matmuls (diag(r)·(P·V) == (diag(r)·P)·V).
    def score_block(s0):
        s1 = min(s0 + kv_block, n)
        sc = jnp.einsum('bqd,bkd->bqk', q, k[:, s0:s1, :],
                        preferred_element_type=jnp.float32)     # (hb, n, blk)
        return sc, v[:, s0:s1, :]

    sc, v_b = score_block(0)
    m_i = jnp.max(sc, axis=-1, keepdims=True)
    p = jnp.exp(sc - m_i)
    l_i = jnp.sum(p, axis=-1, keepdims=True)
    acc = jnp.einsum('bqk,bkd->bqd', p.astype(cdt), v_b,
                     preferred_element_type=jnp.float32)        # (hb, n, d) f32
    for s0 in range(kv_block, n, kv_block):
        sc, v_b = score_block(s0)
        m_new = jnp.maximum(m_i, jnp.max(sc, axis=-1, keepdims=True))
        alpha = jnp.exp(m_i - m_new)
        p = jnp.exp(sc - m_new)
        l_i = alpha * l_i + jnp.sum(p, axis=-1, keepdims=True)
        acc = alpha * acc + jnp.einsum('bqk,bkd->bqd', p.astype(cdt), v_b,
                                       preferred_element_type=jnp.float32)
        m_i = m_new

    oh = acc * pl.reciprocal(l_i, approx=True)                  # (hb, n, d) f32
    oh = oh.reshape(heads, bt, n, d)

    # ---- value gating + SINGLE K=dim_inner output projection ------------------
    # Gated values are written per head into a lane-dense (m, di) compute-dtype
    # scratch, then the output GEMM runs once with K = di (better systolic-depth
    # utilisation than heads separate K=d dots) and a lane-dense final store.
    for h in range(heads):
        g_s[:, h * d:(h + 1) * d] = (oh[h].reshape(m, d).astype(cdt)
                                     * gates[:, h * d:(h + 1) * d])
    o_ref[...] = jnp.dot(g_s[...], w_out_ref[...],
                         preferred_element_type=jnp.float32).astype(o_ref.dtype)


def prepare_attention_params(w_qkv, w_gates, w_out):
    """One-time parameter prep (hoisted out of the per-call forward path):
    fuse the qkv + gate projection weights and pad the output projection to a
    128-lane multiple so in-kernel stores are lane-dense."""
    dim = w_qkv.shape[0]
    dim_inner = w_gates.shape[1]
    assert w_qkv.shape == (dim, 3 * dim_inner)
    assert w_out.shape == (dim_inner, dim)
    w_in = jnp.concatenate([w_qkv, w_gates], axis=1)            # (dim, 4*dim_inner)
    p_out = ((dim + 127) // 128) * 128
    if p_out != dim:
        w_out_p = jnp.concatenate(
            [w_out, jnp.zeros((dim_inner, p_out - dim), w_out.dtype)], axis=1)
    else:
        w_out_p = w_out
    return w_in, w_out_p


def _lane_pad(x):
    return ((x + 127) // 128) * 128


def _vmem_bytes(bt, n, dim, dim_inner, p_out, heads, d, kv_block, itemsize):
    """Rough per-grid-step VMEM estimate (lane-padded), used to size bt."""
    rows = bt * n
    hb = heads * bt
    by = 0
    by += 2 * rows * _lane_pad(dim) * itemsize            # x block (double buffered)
    by += 2 * dim * _lane_pad(4 * dim_inner) * itemsize   # fused projection weights
    by += 2 * dim_inner * _lane_pad(p_out) * itemsize     # output projection weights
    by += 2 * rows * _lane_pad(p_out) * itemsize          # output block
    by += rows * _lane_pad(4 * dim_inner) * 4             # f32 projection activations
    by += 3 * hb * max(n, 8) * _lane_pad(d) * itemsize    # q/k/v relayout scratch
    by += rows * _lane_pad(dim_inner) * itemsize          # gated-value scratch
    by += hb * n * _lane_pad(kv_block) * 4                # one f32 score block
    by += hb * n * _lane_pad(d) * 4                       # f32 attention accumulator
    return by


def _pick_bt(b, n, dim, dim_inner, p_out, heads, d, kv_block, itemsize,
             vmem_budget):
    """Largest divisor of b that (a) keeps >= 2 grid steps when b >= 2 so both
    v7x TensorCores get work, (b) keeps a sublane-aligned row block, and
    (c) fits the per-step VMEM budget.  Fallback: the whole problem as a single
    block (block_shape == array shape carries no (8,128) divisibility rule)."""
    max_bt = max(1, b // 2) if b >= 2 else 1
    for c in range(max_bt, 0, -1):
        if b % c != 0:
            continue
        if (c * n) % 8 != 0:
            continue
        if _vmem_bytes(c, n, dim, dim_inner, p_out, heads, d, kv_block,
                       itemsize) > vmem_budget:
            continue
        return c
    return b


def attention_forward(x, w_in, w_out_p, *, heads, dim_head):
    b, n, dim = x.shape
    dim_inner = heads * dim_head
    assert w_in.shape == (dim, 4 * dim_inner)
    p_out = w_out_p.shape[1]
    assert w_out_p.shape[0] == dim_inner and p_out >= dim

    kv_block = n if n <= 512 else 512
    itemsize = jnp.dtype(x.dtype).itemsize
    bt = _pick_bt(b, n, dim, dim_inner, p_out, heads, dim_head, kv_block,
                  itemsize, vmem_budget=28 * 1024 * 1024)
    rows = bt * n

    x2d = x.reshape(b * n, dim)                                 # fold batch into M

    kernel = functools.partial(_attention_kernel, heads=heads,
                               dim_head=dim_head, seq_len=n, kv_block=kv_block)

    out2d = pl.pallas_call(
        kernel,
        out_shape=jax.ShapeDtypeStruct((b * n, p_out), x.dtype),
        grid_spec=pltpu.PrefetchScalarGridSpec(
            num_scalar_prefetch=0,
            grid=(b // bt,),
            in_specs=[
                pl.BlockSpec((rows, dim), lambda i: (i, 0)),
                # Grid-invariant weights (constant index_map) -> DMA'd once.
                # TODO(synk): on v7x, pipeline_mode=pl.Buffered(1) on these two
                # would drop the redundant second weight buffer and free VMEM.
                pl.BlockSpec((dim, 4 * dim_inner), lambda i: (0, 0)),
                pl.BlockSpec((dim_inner, p_out), lambda i: (0, 0)),
            ],
            out_specs=pl.BlockSpec((rows, p_out), lambda i: (i, 0)),
            scratch_shapes=[
                pltpu.VMEM((heads, bt, n, dim_head), x.dtype),  # q (compute dtype)
                pltpu.VMEM((heads, bt, n, dim_head), x.dtype),  # k
                pltpu.VMEM((heads, bt, n, dim_head), x.dtype),  # v
                pltpu.VMEM((rows, dim_inner), x.dtype),         # gated values
            ],
        ),
        compiler_params=pltpu.CompilerParams(
            dimension_semantics=("parallel",),
            vmem_limit_bytes=48 * 1024 * 1024),
    )(x2d, w_in, w_out_p)

    out2d = out2d if p_out == dim else out2d[:, :dim]
    return out2d.reshape(b, n, dim)


def attention_reference(x, w_qkv, w_gates, w_out, *, heads, dim_head):
    """Plain-JAX reference mirroring the PyTorch module (dropout=0, eval mode)."""
    b, n, dim = x.shape
    dim_inner = heads * dim_head
    scale = dim_head ** (-0.5)

    qkv = x @ w_qkv                                            # (b, n, 3*h*d)
    qkv = qkv.reshape(b, n, 3, heads, dim_head)
    qkv = jnp.transpose(qkv, (2, 0, 3, 1, 4))                  # (3, b, h, n, d)
    q, k, v = qkv[0], qkv[1], qkv[2]

    s = jnp.einsum('bhid,bhjd->bhij', q, k) * scale
    p = jax.nn.softmax(s, axis=-1)
    out = jnp.einsum('bhij,bhjd->bhid', p, v)                  # (b, h, n, d)

    g = x @ w_gates
    gates = g * jax.nn.sigmoid(g)
    gates = gates.reshape(b, n, heads, dim_head).transpose(0, 2, 1, 3)

    out = out * gates
    out = out.transpose(0, 2, 1, 3).reshape(b, n, dim_inner)   # b h n d -> b n (h d)
    return out @ w_out


if __name__ == "__main__":
    # Small shapes consistent with the module: dim=32, heads=4, dim_head=32.
    batch, seq, dim = 2, 8, 32
    heads, dim_head = 4, 32
    dim_inner = heads * dim_head

    key = jax.random.PRNGKey(0)
    kx, k1, k2, k3 = jax.random.split(key, 4)

    x = jax.random.normal(kx, (batch, seq, dim), dtype=jnp.float32)
    w_qkv = 0.02 * jax.random.normal(k1, (dim, 3 * dim_inner), dtype=jnp.float32)
    w_gates = 0.02 * jax.random.normal(k2, (dim, dim_inner), dtype=jnp.float32)
    w_out = 0.02 * jax.random.normal(k3, (dim_inner, dim), dtype=jnp.float32)

    # bf16 operands are the MXU-native fast path; the kernel accumulates in f32.
    xb, wqb, wgb, wob = (t.astype(jnp.bfloat16) for t in (x, w_qkv, w_gates, w_out))

    # One-time parameter prep (hoisted out of the steady-state forward path).
    w_in, w_out_p = prepare_attention_params(wqb, wgb, wob)

    out = attention_forward(xb, w_in, w_out_p, heads=heads, dim_head=dim_head)
    out = jax.block_until_ready(out)
    assert out.shape == (batch, seq, dim)
    assert out.dtype == jnp.bfloat16

    ref = attention_reference(xb.astype(jnp.float32), wqb.astype(jnp.float32),
                              wgb.astype(jnp.float32), wob.astype(jnp.float32),
                              heads=heads, dim_head=dim_head)
    ref_scale = float(jnp.max(jnp.abs(ref)))
    err = float(jnp.max(jnp.abs(out.astype(jnp.float32) - ref)))
    # Tightened vs the previous 10%: a handful of bf16 roundings + the EUP
    # approximate reciprocal bound the error well under 5% of the output scale.
    assert err <= 0.05 * ref_scale + 1e-6, (
        f"mismatch vs reference: max abs err {err}, ref scale {ref_scale}")

    print("KERNEL_OK")
</pallas_src>

<mosaic_0001>
module attributes {stable_mosaic.version = 11 : i64} {
  func.func @_attention_kernel(%arg0: i32, %arg1: memref<8x32xbf16, #tpu.memory_space<vmem>>, %arg2: memref<32x512xbf16, #tpu.memory_space<vmem>>, %arg3: memref<128x128xbf16, #tpu.memory_space<vmem>>, %arg4: memref<8x128xbf16, #tpu.memory_space<vmem>>, %arg5: memref<4x1x8x32xbf16, #tpu.memory_space<vmem>>, %arg6: memref<4x1x8x32xbf16, #tpu.memory_space<vmem>>, %arg7: memref<4x1x8x32xbf16, #tpu.memory_space<vmem>>, %arg8: memref<8x128xbf16, #tpu.memory_space<vmem>>) attributes {dimension_semantics = [#tpu.dimension_semantics<parallel>], iteration_bounds = array<i64: 2>, scalar_prefetch = 0 : i64, scratch_operands = 4 : i64, tpu.core_type = #tpu.core_type<tc>, window_params = [{transform_indices = @transform_0, window_bounds = array<i64: 8, 32>}, {pipeline_mode = #tpu.pipeline_mode<synchronous>, transform_indices = @transform_1, window_bounds = array<i64: 32, 512>}, {pipeline_mode = #tpu.pipeline_mode<synchronous>, transform_indices = @transform_2, window_bounds = array<i64: 128, 128>}, {transform_indices = @transform_3, window_bounds = array<i64: 8, 128>}]} {
    %c0 = arith.constant 0 : index
    %c0_0 = arith.constant 0 : index
    %0 = vector.load %arg1[%c0, %c0_0] : memref<8x32xbf16, #tpu.memory_space<vmem>>, vector<8x32xbf16>
    %c0_1 = arith.constant 0 : index
    %c0_2 = arith.constant 0 : index
    %1 = vector.load %arg2[%c0_1, %c0_2] : memref<32x512xbf16, #tpu.memory_space<vmem>>, vector<32x512xbf16>
    %cst = arith.constant dense<0.000000e+00> : vector<8x512xf32>
    %2 = tpu.matmul %0, %1, %cst {dimension_numbers = #tpu.dot_dimension_numbers<[1], [0], [0], [1], [0, 0, 1, 1], [], []>} : vector<8x32xbf16>, vector<32x512xbf16>, vector<8x512xf32> -> vector<8x512xf32>
    %3 = vector.extract_strided_slice %2 {offsets = [0, 384], sizes = [8, 128], strides = [1, 1]} : vector<8x512xf32> to vector<8x128xf32>
    %4 = arith.negf %3 : vector<8x128xf32>
    %5 = math.exp %4 : vector<8x128xf32>
    %cst_3 = arith.constant 1.000000e+00 : f32
    %6 = vector.broadcast %cst_3 : f32 to vector<8x128xf32>
    %7 = arith.addf %6, %5 : vector<8x128xf32>
    %8 = arith.divf %6, %7 : vector<8x128xf32>
    %9 = arith.mulf %3, %8 : vector<8x128xf32>
    %10 = arith.truncf %9 : vector<8x128xf32> to vector<8x128xbf16>
    %11 = vector.extract_strided_slice %2 {offsets = [0, 0], sizes = [8, 32], strides = [1, 1]} : vector<8x512xf32> to vector<8x32xf32>
    %cst_4 = arith.constant 0.176776692 : f32
    %12 = vector.broadcast %cst_4 : f32 to vector<8x32xf32>
    %13 = arith.mulf %11, %12 : vector<8x32xf32>
    %14 = vector.shape_cast %13 : vector<8x32xf32> to vector<1x8x32xf32>
    %15 = arith.truncf %14 : vector<1x8x32xf32> to vector<1x8x32xbf16>
    %c0_5 = arith.constant 0 : index
    %c0_6 = arith.constant 0 : index
    %c0_7 = arith.constant 0 : index
    %c0_8 = arith.constant 0 : index
    %16 = vector.load %arg5[%c0_5, %c0_6, %c0_7, %c0_8] : memref<4x1x8x32xbf16, #tpu.memory_space<vmem>>, vector<1x1x8x32xbf16>
    %17 = vector.shape_cast %16 : vector<1x1x8x32xbf16> to vector<1x8x32xbf16>
    %18 = vector.shape_cast %15 : vector<1x8x32xbf16> to vector<1x1x8x32xbf16>
    tpu.vector_store %arg5[%c0_5, %c0_6, %c0_7, %c0_8], %18 {strides = array<i32>} : memref<4x1x8x32xbf16, #tpu.memory_space<vmem>>, vector<1x1x8x32xbf16>,
    %19 = vector.extract_strided_slice %2 {offsets = [0, 128], sizes = [8, 32], strides = [1, 1]} : vector<8x512xf32> to vector<8x32xf32>
    %20 = vector.shape_cast %19 : vector<8x32xf32> to vector<1x8x32xf32>
    %21 = arith.truncf %20 : vector<1x8x32xf32> to vector<1x8x32xbf16>
    %c0_9 = arith.constant 0 : index
    %c0_10 = arith.constant 0 : index
    %c0_11 = arith.constant 0 : index
    %c0_12 = arith.constant 0 : index
    %22 = vector.load %arg6[%c0_9, %c0_10, %c0_11, %c0_12] : memref<4x1x8x32xbf16, #tpu.memory_space<vmem>>, vector<1x1x8x32xbf16>
    %23 = vector.shape_cast %22 : vector<1x1x8x32xbf16> to vector<1x8x32xbf16>
    %24 = vector.shape_cast %21 : vector<1x8x32xbf16> to vector<1x1x8x32xbf16>
    tpu.vector_store %arg6[%c0_9, %c0_10, %c0_11, %c0_12], %24 {strides = array<i32>} : memref<4x1x8x32xbf16, #tpu.memory_space<vmem>>, vector<1x1x8x32xbf16>,
    %25 = vector.extract_strided_slice %2 {offsets = [0, 256], sizes = [8, 32], strides = [1, 1]} : vector<8x512xf32> to vector<8x32xf32>
    %26 = vector.shape_cast %25 : vector<8x32xf32> to vector<1x8x32xf32>
    %27 = arith.truncf %26 : vector<1x8x32xf32> to vector<1x8x32xbf16>
    %c0_13 = arith.constant 0 : index
    %c0_14 = arith.constant 0 : index
    %c0_15 = arith.constant 0 : index
    %c0_16 = arith.constant 0 : index
    %28 = vector.load %arg7[%c0_13, %c0_14, %c0_15, %c0_16] : memref<4x1x8x32xbf16, #tpu.memory_space<vmem>>, vector<1x1x8x32xbf16>
    %29 = vector.shape_cast %28 : vector<1x1x8x32xbf16> to vector<1x8x32xbf16>
    %30 = vector.shape_cast %27 : vector<1x8x32xbf16> to vector<1x1x8x32xbf16>
    tpu.vector_store %arg7[%c0_13, %c0_14, %c0_15, %c0_16], %30 {strides = array<i32>} : memref<4x1x8x32xbf16, #tpu.memory_space<vmem>>, vector<1x1x8x32xbf16>,
    %31 = vector.extract_strided_slice %2 {offsets = [0, 32], sizes = [8, 32], strides = [1, 1]} : vector<8x512xf32> to vector<8x32xf32>
    %cst_17 = arith.constant 0.176776692 : f32
    %32 = vector.broadcast %cst_17 : f32 to vector<8x32xf32>
    %33 = arith.mulf %31, %32 : vector<8x32xf32>
    %34 = vector.shape_cast %33 : vector<8x32xf32> to vector<1x8x32xf32>
    %35 = arith.truncf %34 : vector<1x8x32xf32> to vector<1x8x32xbf16>
    %c1 = arith.constant 1 : index
    %c0_18 = arith.constant 0 : index
    %c0_19 = arith.constant 0 : index
    %c0_20 = arith.constant 0 : index
    %36 = vector.load %arg5[%c1, %c0_18, %c0_19, %c0_20] : memref<4x1x8x32xbf16, #tpu.memory_space<vmem>>, vector<1x1x8x32xbf16>
    %37 = vector.shape_cast %36 : vector<1x1x8x32xbf16> to vector<1x8x32xbf16>
    %38 = vector.shape_cast %35 : vector<1x8x32xbf16> to vector<1x1x8x32xbf16>
    tpu.vector_store %arg5[%c1, %c0_18, %c0_19, %c0_20], %38 {strides = array<i32>} : memref<4x1x8x32xbf16, #tpu.memory_space<vmem>>, vector<1x1x8x32xbf16>,
    %39 = vector.extract_strided_slice %2 {offsets = [0, 160], sizes = [8, 32], strides = [1, 1]} : vector<8x512xf32> to vector<8x32xf32>
    %40 = vector.shape_cast %39 : vector<8x32xf32> to vector<1x8x32xf32>
    %41 = arith.truncf %40 : vector<1x8x32xf32> to vector<1x8x32xbf16>
    %c1_21 = arith.constant 1 : index
    %c0_22 = arith.constant 0 : index
    %c0_23 = arith.constant 0 : index
    %c0_24 = arith.constant 0 : index
    %42 = vector.load %arg6[%c1_21, %c0_22, %c0_23, %c0_24] : memref<4x1x8x32xbf16, #tpu.memory_space<vmem>>, vector<1x1x8x32xbf16>
    %43 = vector.shape_cast %42 : vector<1x1x8x32xbf16> to vector<1x8x32xbf16>
    %44 = vector.shape_cast %41 : vector<1x8x32xbf16> to vector<1x1x8x32xbf16>
    tpu.vector_store %arg6[%c1_21, %c0_22, %c0_23, %c0_24], %44 {strides = array<i32>} : memref<4x1x8x32xbf16, #tpu.memory_space<vmem>>, vector<1x1x8x32xbf16>,
    %45 = vector.extract_strided_slice %2 {offsets = [0, 288], sizes = [8, 32], strides = [1, 1]} : vector<8x512xf32> to vector<8x32xf32>
    %46 = vector.shape_cast %45 : vector<8x32xf32> to vector<1x8x32xf32>
    %47 = arith.truncf %46 : vector<1x8x32xf32> to vector<1x8x32xbf16>
    %c1_25 = arith.constant 1 : index
    %c0_26 = arith.constant 0 : index
    %c0_27 = arith.constant 0 : index
    %c0_28 = arith.constant 0 : index
    %48 = vector.load %arg7[%c1_25, %c0_26, %c0_27, %c0_28] : memref<4x1x8x32xbf16, #tpu.memory_space<vmem>>, vector<1x1x8x32xbf16>
    %49 = vector.shape_cast %48 : vector<1x1x8x32xbf16> to vector<1x8x32xbf16>
    %50 = vector.shape_cast %47 : vector<1x8x32xbf16> to vector<1x1x8x32xbf16>
    tpu.vector_store %arg7[%c1_25, %c0_26, %c0_27, %c0_28], %50 {strides = array<i32>} : memref<4x1x8x32xbf16, #tpu.memory_space<vmem>>, vector<1x1x8x32xbf16>,
    %51 = vector.extract_strided_slice %2 {offsets = [0, 64], sizes = [8, 32], strides = [1, 1]} : vector<8x512xf32> to vector<8x32xf32>
    %cst_29 = arith.constant 0.176776692 : f32
    %52 = vector.broadcast %cst_29 : f32 to vector<8x32xf32>
    %53 = arith.mulf %51, %52 : vector<8x32xf32>
    %54 = vector.shape_cast %53 : vector<8x32xf32> to vector<1x8x32xf32>
    %55 = arith.truncf %54 : vector<1x8x32xf32> to vector<1x8x32xbf16>
    %c2 = arith.constant 2 : index
    %c0_30 = arith.constant 0 : index
    %c0_31 = arith.constant 0 : index
    %c0_32 = arith.constant 0 : index
    %56 = vector.load %arg5[%c2, %c0_30, %c0_31, %c0_32] : memref<4x1x8x32xbf16, #tpu.memory_space<vmem>>, vector<1x1x8x32xbf16>
    %57 = vector.shape_cast %56 : vector<1x1x8x32xbf16> to vector<1x8x32xbf16>
    %58 = vector.shape_cast %55 : vector<1x8x32xbf16> to vector<1x1x8x32xbf16>
    tpu.vector_store %arg5[%c2, %c0_30, %c0_31, %c0_32], %58 {strides = array<i32>} : memref<4x1x8x32xbf16, #tpu.memory_space<vmem>>, vector<1x1x8x32xbf16>,
    %59 = vector.extract_strided_slice %2 {offsets = [0, 192], sizes = [8, 32], strides = [1, 1]} : vector<8x512xf32> to vector<8x32xf32>
    %60 = vector.shape_cast %59 : vector<8x32xf32> to vector<1x8x32xf32>
    %61 = arith.truncf %60 : vector<1x8x32xf32> to vector<1x8x32xbf16>
    %c2_33 = arith.constant 2 : index
    %c0_34 = arith.constant 0 : index
    %c0_35 = arith.constant 0 : index
    %c0_36 = arith.constant 0 : index
    %62 = vector.load %arg6[%c2_33, %c0_34, %c0_35, %c0_36] : memref<4x1x8x32xbf16, #tpu.memory_space<vmem>>, vector<1x1x8x32xbf16>
    %63 = vector.shape_cast %62 : vector<1x1x8x32xbf16> to vector<1x8x32xbf16>
    %64 = vector.shape_cast %61 : vector<1x8x32xbf16> to vector<1x1x8x32xbf16>
    tpu.vector_store %arg6[%c2_33, %c0_34, %c0_35, %c0_36], %64 {strides = array<i32>} : memref<4x1x8x32xbf16, #tpu.memory_space<vmem>>, vector<1x1x8x32xbf16>,
    %65 = vector.extract_strided_slice %2 {offsets = [0, 320], sizes = [8, 32], strides = [1, 1]} : vector<8x512xf32> to vector<8x32xf32>
    %66 = vector.shape_cast %65 : vector<8x32xf32> to vector<1x8x32xf32>
    %67 = arith.truncf %66 : vector<1x8x32xf32> to vector<1x8x32xbf16>
    %c2_37 = arith.constant 2 : index
    %c0_38 = arith.constant 0 : index
    %c0_39 = arith.constant 0 : index
    %c0_40 = arith.constant 0 : index
    %68 = vector.load %arg7[%c2_37, %c0_38, %c0_39, %c0_40] : memref<4x1x8x32xbf16, #tpu.memory_space<vmem>>, vector<1x1x8x32xbf16>
    %69 = vector.shape_cast %68 : vector<1x1x8x32xbf16> to vector<1x8x32xbf16>
    %70 = vector.shape_cast %67 : vector<1x8x32xbf16> to vector<1x1x8x32xbf16>
    tpu.vector_store %arg7[%c2_37, %c0_38, %c0_39, %c0_40], %70 {strides = array<i32>} : memref<4x1x8x32xbf16, #tpu.memory_space<vmem>>, vector<1x1x8x32xbf16>,
    %71 = vector.extract_strided_slice %2 {offsets = [0, 96], sizes = [8, 32], strides = [1, 1]} : vector<8x512xf32> to vector<8x32xf32>
    %cst_41 = arith.constant 0.176776692 : f32
    %72 = vector.broadcast %cst_41 : f32 to vector<8x32xf32>
    %73 = arith.mulf %71, %72 : vector<8x32xf32>
    %74 = vector.shape_cast %73 : vector<8x32xf32> to vector<1x8x32xf32>
    %75 = arith.truncf %74 : vector<1x8x32xf32> to vector<1x8x32xbf16>
    %c3 = arith.constant 3 : index
    %c0_42 = arith.constant 0 : index
    %c0_43 = arith.constant 0 : index
    %c0_44 = arith.constant 0 : index
    %76 = vector.load %arg5[%c3, %c0_42, %c0_43, %c0_44] : memref<4x1x8x32xbf16, #tpu.memory_space<vmem>>, vector<1x1x8x32xbf16>
    %77 = vector.shape_cast %76 : vector<1x1x8x32xbf16> to vector<1x8x32xbf16>
    %78 = vector.shape_cast %75 : vector<1x8x32xbf16> to vector<1x1x8x32xbf16>
    tpu.vector_store %arg5[%c3, %c0_42, %c0_43, %c0_44], %78 {strides = array<i32>} : memref<4x1x8x32xbf16, #tpu.memory_space<vmem>>, vector<1x1x8x32xbf16>,
    %79 = vector.extract_strided_slice %2 {offsets = [0, 224], sizes = [8, 32], strides = [1, 1]} : vector<8x512xf32> to vector<8x32xf32>
    %80 = vector.shape_cast %79 : vector<8x32xf32> to vector<1x8x32xf32>
    %81 = arith.truncf %80 : vector<1x8x32xf32> to vector<1x8x32xbf16>
    %c3_45 = arith.constant 3 : index
    %c0_46 = arith.constant 0 : index
    %c0_47 = arith.constant 0 : index
    %c0_48 = arith.constant 0 : index
    %82 = vector.load %arg6[%c3_45, %c0_46, %c0_47, %c0_48] : memref<4x1x8x32xbf16, #tpu.memory_space<vmem>>, vector<1x1x8x32xbf16>
    %83 = vector.shape_cast %82 : vector<1x1x8x32xbf16> to vector<1x8x32xbf16>
    %84 = vector.shape_cast %81 : vector<1x8x32xbf16> to vector<1x1x8x32xbf16>
    tpu.vector_store %arg6[%c3_45, %c0_46, %c0_47, %c0_48], %84 {strides = array<i32>} : memref<4x1x8x32xbf16, #tpu.memory_space<vmem>>, vector<1x1x8x32xbf16>,
    %85 = vector.extract_strided_slice %2 {offsets = [0, 352], sizes = [8, 32], strides = [1, 1]} : vector<8x512xf32> to vector<8x32xf32>
    %86 = vector.shape_cast %85 : vector<8x32xf32> to vector<1x8x32xf32>
    %87 = arith.truncf %86 : vector<1x8x32xf32> to vector<1x8x32xbf16>
    %c3_49 = arith.constant 3 : index
    %c0_50 = arith.constant 0 : index
    %c0_51 = arith.constant 0 : index
    %c0_52 = arith.constant 0 : index
    %88 = vector.load %arg7[%c3_49, %c0_50, %c0_51, %c0_52] : memref<4x1x8x32xbf16, #tpu.memory_space<vmem>>, vector<1x1x8x32xbf16>
    %89 = vector.shape_cast %88 : vector<1x1x8x32xbf16> to vector<1x8x32xbf16>
    %90 = vector.shape_cast %87 : vector<1x8x32xbf16> to vector<1x1x8x32xbf16>
    tpu.vector_store %arg7[%c3_49, %c0_50, %c0_51, %c0_52], %90 {strides = array<i32>} : memref<4x1x8x32xbf16, #tpu.memory_space<vmem>>, vector<1x1x8x32xbf16>,
    %c0_53 = arith.constant 0 : index
    %c0_54 = arith.constant 0 : index
    %c0_55 = arith.constant 0 : index
    %c0_56 = arith.constant 0 : index
    %91 = vector.load %arg5[%c0_53, %c0_54, %c0_55, %c0_56] : memref<4x1x8x32xbf16, #tpu.memory_space<vmem>>, vector<4x1x8x32xbf16>
    %92 = vector.shape_cast %91 : vector<4x1x8x32xbf16> to vector<4x8x32xbf16>
    %c0_57 = arith.constant 0 : index
    %c0_58 = arith.constant 0 : index
    %c0_59 = arith.constant 0 : index
    %c0_60 = arith.constant 0 : index
    %93 = vector.load %arg6[%c0_57, %c0_58, %c0_59, %c0_60] : memref<4x1x8x32xbf16, #tpu.memory_space<vmem>>, vector<4x1x8x32xbf16>
    %94 = vector.shape_cast %93 : vector<4x1x8x32xbf16> to vector<4x8x32xbf16>
    %c0_61 = arith.constant 0 : index
    %c0_62 = arith.constant 0 : index
    %c0_63 = arith.constant 0 : index
    %c0_64 = arith.constant 0 : index
    %95 = vector.load %arg7[%c0_61, %c0_62, %c0_63, %c0_64] : memref<4x1x8x32xbf16, #tpu.memory_space<vmem>>, vector<4x1x8x32xbf16>
    %96 = vector.shape_cast %95 : vector<4x1x8x32xbf16> to vector<4x8x32xbf16>
    "tpu.trace_start"() <{level = 10 : i32, message = "bqd,bkd->bqk"}> : () -> ()
    %cst_65 = arith.constant dense<0.000000e+00> : vector<4x8x8xf32>
    %97 = tpu.matmul %92, %94, %cst_65 {dimension_numbers = #tpu.dot_dimension_numbers<[2], [2], [1], [1], [0, 0, 0, 1, 1, 1], [0], [0]>} : vector<4x8x32xbf16>, vector<4x8x32xbf16>, vector<4x8x8xf32> -> vector<4x8x8xf32>
    "tpu.trace_stop"() : () -> ()
    %cst_66 = arith.constant dense<0xFF800000> : vector<4x8xf32>
    %98 = vector.multi_reduction <maximumf>, %97, %cst_66 [2] : vector<4x8x8xf32> to vector<4x8xf32>
    %99 = vector.shape_cast %98 : vector<4x8xf32> to vector<4x8x1xf32>
    %100 = vector.broadcast %99 : vector<4x8x1xf32> to vector<4x8x8xf32>
    %101 = arith.subf %97, %100 : vector<4x8x8xf32>
    %102 = math.exp %101 : vector<4x8x8xf32>
    %cst_67 = arith.constant dense<0.000000e+00> : vector<4x8xf32>
    %103 = vector.multi_reduction <add>, %102, %cst_67 [2] : vector<4x8x8xf32> to vector<4x8xf32>
    %104 = vector.shape_cast %103 : vector<4x8xf32> to vector<4x8x1xf32>
    %105 = arith.truncf %102 : vector<4x8x8xf32> to vector<4x8x8xbf16>
    "tpu.trace_start"() <{level = 10 : i32, message = "bqk,bkd->bqd"}> : () -> ()
    %cst_68 = arith.constant dense<0.000000e+00> : vector<4x8x32xf32>
    %106 = tpu.matmul %105, %96, %cst_68 {dimension_numbers = #tpu.dot_dimension_numbers<[2], [1], [1], [2], [0, 0, 0, 1, 1, 2], [0], [0]>} : vector<4x8x8xbf16>, vector<4x8x32xbf16>, vector<4x8x32xf32> -> vector<4x8x32xf32>
    "tpu.trace_stop"() : () -> ()
    %107 = tpu.reciprocal %104 {approx = true} : vector<4x8x1xf32> -> vector<4x8x1xf32>
    %108 = vector.broadcast %107 : vector<4x8x1xf32> to vector<4x8x32xf32>
    %109 = arith.mulf %106, %108 : vector<4x8x32xf32>
    %110 = vector.shape_cast %109 : vector<4x8x32xf32> to vector<4x1x8x32xf32>
    %111 = vector.extract_strided_slice %110 {offsets = [0, 0, 0, 0], sizes = [1, 1, 8, 32], strides = [1, 1, 1, 1]} : vector<4x1x8x32xf32> to vector<1x1x8x32xf32>
    %112 = vector.shape_cast %111 : vector<1x1x8x32xf32> to vector<1x8x32xf32>
    %113 = vector.shape_cast %112 : vector<1x8x32xf32> to vector<8x32xf32>
    %114 = arith.truncf %113 : vector<8x32xf32> to vector<8x32xbf16>
    %115 = vector.extract_strided_slice %10 {offsets = [0, 0], sizes = [8, 32], strides = [1, 1]} : vector<8x128xbf16> to vector<8x32xbf16>
    %116 = arith.mulf %114, %115 : vector<8x32xbf16>
    %c0_69 = arith.constant 0 : index
    %c0_70 = arith.constant 0 : index
    %117 = vector.load %arg8[%c0_69, %c0_70] : memref<8x128xbf16, #tpu.memory_space<vmem>>, vector<8x32xbf16>
    tpu.vector_store %arg8[%c0_69, %c0_70], %116 {strides = array<i32>} : memref<8x128xbf16, #tpu.memory_space<vmem>>, vector<8x32xbf16>,
    %118 = vector.extract_strided_slice %110 {offsets = [1, 0, 0, 0], sizes = [1, 1, 8, 32], strides = [1, 1, 1, 1]} : vector<4x1x8x32xf32> to vector<1x1x8x32xf32>
    %119 = vector.shape_cast %118 : vector<1x1x8x32xf32> to vector<1x8x32xf32>
    %120 = vector.shape_cast %119 : vector<1x8x32xf32> to vector<8x32xf32>
    %121 = arith.truncf %120 : vector<8x32xf32> to vector<8x32xbf16>
    %122 = vector.extract_strided_slice %10 {offsets = [0, 32], sizes = [8, 32], strides = [1, 1]} : vector<8x128xbf16> to vector<8x32xbf16>
    %123 = arith.mulf %121, %122 : vector<8x32xbf16>
    %c0_71 = arith.constant 0 : index
    %c32 = arith.constant 32 : index
    %124 = vector.load %arg8[%c0_71, %c32] : memref<8x128xbf16, #tpu.memory_space<vmem>>, vector<8x32xbf16>
    tpu.vector_store %arg8[%c0_71, %c32], %123 {strides = array<i32>} : memref<8x128xbf16, #tpu.memory_space<vmem>>, vector<8x32xbf16>,
    %125 = vector.extract_strided_slice %110 {offsets = [2, 0, 0, 0], sizes = [1, 1, 8, 32], strides = [1, 1, 1, 1]} : vector<4x1x8x32xf32> to vector<1x1x8x32xf32>
    %126 = vector.shape_cast %125 : vector<1x1x8x32xf32> to vector<1x8x32xf32>
    %127 = vector.shape_cast %126 : vector<1x8x32xf32> to vector<8x32xf32>
    %128 = arith.truncf %127 : vector<8x32xf32> to vector<8x32xbf16>
    %129 = vector.extract_strided_slice %10 {offsets = [0, 64], sizes = [8, 32], strides = [1, 1]} : vector<8x128xbf16> to vector<8x32xbf16>
    %130 = arith.mulf %128, %129 : vector<8x32xbf16>
    %c0_72 = arith.constant 0 : index
    %c64 = arith.constant 64 : index
    %131 = vector.load %arg8[%c0_72, %c64] : memref<8x128xbf16, #tpu.memory_space<vmem>>, vector<8x32xbf16>
    tpu.vector_store %arg8[%c0_72, %c64], %130 {strides = array<i32>} : memref<8x128xbf16, #tpu.memory_space<vmem>>, vector<8x32xbf16>,
    %132 = vector.extract_strided_slice %110 {offsets = [3, 0, 0, 0], sizes = [1, 1, 8, 32], strides = [1, 1, 1, 1]} : vector<4x1x8x32xf32> to vector<1x1x8x32xf32>
    %133 = vector.shape_cast %132 : vector<1x1x8x32xf32> to vector<1x8x32xf32>
    %134 = vector.shape_cast %133 : vector<1x8x32xf32> to vector<8x32xf32>
    %135 = arith.truncf %134 : vector<8x32xf32> to vector<8x32xbf16>
    %136 = vector.extract_strided_slice %10 {offsets = [0, 96], sizes = [8, 32], strides = [1, 1]} : vector<8x128xbf16> to vector<8x32xbf16>
    %137 = arith.mulf %135, %136 : vector<8x32xbf16>
    %c0_73 = arith.constant 0 : index
    %c96 = arith.constant 96 : index
    %138 = vector.load %arg8[%c0_73, %c96] : memref<8x128xbf16, #tpu.memory_space<vmem>>, vector<8x32xbf16>
    tpu.vector_store %arg8[%c0_73, %c96], %137 {strides = array<i32>} : memref<8x128xbf16, #tpu.memory_space<vmem>>, vector<8x32xbf16>,
    %c0_74 = arith.constant 0 : index
    %c0_75 = arith.constant 0 : index
    %139 = vector.load %arg8[%c0_74, %c0_75] : memref<8x128xbf16, #tpu.memory_space<vmem>>, vector<8x128xbf16>
    %c0_76 = arith.constant 0 : index
    %c0_77 = arith.constant 0 : index
    %140 = vector.load %arg3[%c0_76, %c0_77] : memref<128x128xbf16, #tpu.memory_space<vmem>>, vector<128x128xbf16>
    %cst_78 = arith.constant dense<0.000000e+00> : vector<8x128xf32>
    %141 = tpu.matmul %139, %140, %cst_78 {dimension_numbers = #tpu.dot_dimension_numbers<[1], [0], [0], [1], [0, 0, 1, 1], [], []>} : vector<8x128xbf16>, vector<128x128xbf16>, vector<8x128xf32> -> vector<8x128xf32>
    %142 = arith.truncf %141 : vector<8x128xf32> to vector<8x128xbf16>
    %c0_79 = arith.constant 0 : index
    %c0_80 = arith.constant 0 : index
    %143 = vector.load %arg4[%c0_79, %c0_80] : memref<8x128xbf16, #tpu.memory_space<vmem>>, vector<8x128xbf16>
    tpu.vector_store %arg4[%c0_79, %c0_80], %142 {strides = array<i32>} : memref<8x128xbf16, #tpu.memory_space<vmem>>, vector<8x128xbf16>,
    return
  }
  func.func @transform_0(%arg0: i32) -> (i32, i32) {
    %c0_i32 = arith.constant 0 : i32
    %c0_i32_0 = arith.constant 0 : i32
    return %arg0, %c0_i32 : i32, i32
  }
  func.func @transform_1(%arg0: i32) -> (i32, i32) {
    %c0_i32 = arith.constant 0 : i32
    %c0_i32_0 = arith.constant 0 : i32
    %c0_i32_1 = arith.constant 0 : i32
    return %c0_i32, %c0_i32_0 : i32, i32
  }
  func.func @transform_2(%arg0: i32) -> (i32, i32) {
    %c0_i32 = arith.constant 0 : i32
    %c0_i32_0 = arith.constant 0 : i32
    %c0_i32_1 = arith.constant 0 : i32
    return %c0_i32, %c0_i32_0 : i32, i32
  }
  func.func @transform_3(%arg0: i32) -> (i32, i32) {
    %c0_i32 = arith.constant 0 : i32
    %c0_i32_0 = arith.constant 0 : i32
    return %arg0, %c0_i32 : i32, i32
  }
}

</mosaic_0001>

<llo_original>
// kernel: tpu_custom_call.1
$region0: #{tpu_custom_call.1}
  #allocation0 [shape = 'u32[]', space=smem, size = 0x4, offset = 0x4, fixed_abs, tag = 'smem constant byte address 0x4 - core index']
  #allocation1 [shape = 'u32[144,128]{1,0:T(1,128)}', space=vmem, size = 0x12000, scoped, tag = 'internal scratch']
  #allocation2 [shape = 'bf16[4,1,8,32]{3,2,1,0:T(8,128)(2,1)}', space=vmem, size = 0x2000, scoped, tag = 'scratch operand']
  #allocation3 [shape = 'bf16[4,1,8,32]{3,2,1,0:T(8,128)(2,1)}', space=vmem, size = 0x2000, scoped, tag = 'scratch operand']
  #allocation4 [shape = 'bf16[4,1,8,32]{3,2,1,0:T(8,128)(2,1)}', space=vmem, size = 0x2000, scoped, tag = 'scratch operand']
  #allocation5 [shape = 'bf16[8,128]{1,0:T(8,128)(2,1)}', space=vmem, size = 0x800, scoped, tag = 'scratch operand']
  %s0 = inlined_call_operand.hbm [shape: bf16[16,32], index: 0, kind: input, shape index: {}]
  %s1 = inlined_call_operand.hbm [shape: bf16[32,512], index: 1, kind: input, shape index: {}]
  %s2 = inlined_call_operand.hbm [shape: bf16[128,128], index: 2, kind: input, shape index: {}]
  %s3 = inlined_call_operand.hbm [shape: bf16[16,128], index: 3, kind: output, shape index: {}]
  %s4 = sld [smem:[#allocation0]]
  $region57: #{tpu_custom_call.1} parent=0
    _
  %s6 = ssub.s32 1, %s4
  %s7 = scalar_select 0, %s6, %s4
  $region1: #{tpu_custom_call.1} parent=0
    #allocation6 [shape = 'u8[4096]{0}', space=vmem, size = 0x1000, scoped, tag = 'input window, operand 0']
    #allocation7 [shape = 's32[2]{0}', space=sflag, size = 0x8, scoped, tag = 'scoped memory for tpu_custom_call.1']
    #allocation8 [shape = 's32[2]{0}', space=sflag, size = 0x8, scoped, tag = 'scoped memory for tpu_custom_call.1']
    #allocation9 [shape = 'u8[32768]{0}', space=vmem, size = 0x8000, scoped, tag = 'input window, operand 1, single buffered']
    #allocation10 [shape = 's32[1]{0}', space=sflag, size = 0x4, scoped, tag = 'scoped memory for tpu_custom_call.1']
    #allocation11 [shape = 'u8[32768]{0}', space=vmem, size = 0x8000, scoped, tag = 'input window, operand 2, single buffered']
    #allocation12 [shape = 'u8[4096]{0}', space=vmem, size = 0x1000, scoped, tag = 'output window, operand 0']
    %8 = vsyncpa [#allocation7], 0
    %s9 = scalar_lea.sflag [#allocation7], 1
    %10 = vsyncpa %s9, 0
    %11 = vsyncpa [#allocation10], 0
    %12 = vsyncpa [#allocation8], 0
    %s13 = scalar_lea.sflag [#allocation8], 1
    %14 = vsyncpa %s13, 0
    loop: start=0, step=1, limit=4
    $region2: #{tpu_custom_call.1} parent=1 // loop_pre_header
      _
    $region3: #{tpu_custom_call.1} parent=1 // loop_header
      %s16 = sphi 0, %s20
      %p17 = scmp.ge.s32.totalorder %s16, 4
      %s26 = sphi 0, %s28
      %s29 = sphi 0, %s26
      %s30 = sphi 0, %s29
      %s46 = sphi 0, %s30
      %s50 = sphi 0, %s50
      %s52 = sphi 0, %s50
      %s53 = sphi 0, %s52
      %s67 = sphi 0, %s53
      %s71 = sphi 0, %s71
      %s73 = sphi 0, %s71
      %s74 = sphi 0, %s73
      %s88 = sphi 0, %s74
      %s94 = sphi 0, %s96
      %s97 = sphi 0, %s94
      %s98 = sphi 0, %s97
      %s114 = sphi 0, %s98
    $region4: #{tpu_custom_call.1} parent=1 // loop_header_branch
      %19 = sbr.rel (%p17) target = $region8
    $region5: #{tpu_custom_call.1} parent=1 // loop_body
      %s21 = ssub.s32 %s16, 1
      %s22 = ssub.s32 %s16, 2
      %s23 = sadd.s32 %s16, 1
      %s24 = ssub.s32 %s16, %s23
      %p25 = scmp.eq.s32.totalorder %s24, 0
      %s27 = sadd.s32 %s26, 1
      %s28 = scalar_select %p25, %s26, %s27
      %p31 = pneg %p25
      %p32 = scmp.eq.s32.totalorder %s16, 1
      %p33 = por %p31, %p32
      %p34 = scmp.ne.s32.totalorder %s26, %s29
      %p35 = scmp.eq.s32.totalorder %s16, 0
      %p36 = por %p34, %p35
      %p37 = scmp.ne.s32.totalorder %s26, %s29
      %p38 = scmp.eq.s32.totalorder %s21, 1
      %p39 = por %p37, %p38
      %p40 = scmp.ne.s32.totalorder %s29, %s30
      %p41 = scmp.eq.s32.totalorder %s21, 0
      %p42 = por %p40, %p41
      %p43 = scmp.ne.s32.totalorder %s29, %s30
      %p44 = scmp.eq.s32.totalorder %s22, 1
      %p45 = por %p43, %p44
      %p47 = scmp.ne.s32.totalorder %s30, %s46
      %p48 = scmp.eq.s32.totalorder %s22, 0
      %p49 = por %p47, %p48
      %s51 = sadd.s32 %s50, 1
      %p54 = scmp.eq.s32.totalorder %s16, 1
      %p55 = scmp.ne.s32.totalorder %s50, %s52
      %p56 = scmp.eq.s32.totalorder %s16, 0
      %p57 = por %p55, %p56
      %p58 = scmp.ne.s32.totalorder %s50, %s52
      %p59 = scmp.eq.s32.totalorder %s21, 1
      %p60 = por %p58, %p59
      %p61 = scmp.ne.s32.totalorder %s52, %s53
      %p62 = scmp.eq.s32.totalorder %s21, 0
      %p63 = por %p61, %p62
      %p64 = scmp.ne.s32.totalorder %s52, %s53
      %p65 = scmp.eq.s32.totalorder %s22, 1
      %p66 = por %p64, %p65
      %p68 = scmp.ne.s32.totalorder %s53, %s67
      %p69 = scmp.eq.s32.totalorder %s22, 0
      %p70 = por %p68, %p69
      %s72 = sadd.s32 %s71, 1
      %p75 = scmp.eq.s32.totalorder %s16, 1
      %p76 = scmp.ne.s32.totalorder %s71, %s73
      %p77 = scmp.eq.s32.totalorder %s16, 0
      %p78 = por %p76, %p77
      %p79 = scmp.ne.s32.totalorder %s71, %s73
      %p80 = scmp.eq.s32.totalorder %s21, 1
      %p81 = por %p79, %p80
      %p82 = scmp.ne.s32.totalorder %s73, %s74
      %p83 = scmp.eq.s32.totalorder %s21, 0
      %p84 = por %p82, %p83
      %p85 = scmp.ne.s32.totalorder %s73, %s74
      %p86 = scmp.eq.s32.totalorder %s22, 1
      %p87 = por %p85, %p86
      %p89 = scmp.ne.s32.totalorder %s74, %s88
      %p90 = scmp.eq.s32.totalorder %s22, 0
      %p91 = por %p89, %p90
      %s92 = ssub.s32 %s16, %s23
      %p93 = scmp.eq.s32.totalorder %s92, 0
      %s95 = sadd.s32 %s94, 1
      %s96 = scalar_select %p93, %s94, %s95
      %p99 = pneg %p93
      %p100 = scmp.eq.s32.totalorder %s16, 1
      %p101 = por %p99, %p100
      %p102 = scmp.ne.s32.totalorder %s94, %s97
      %p103 = scmp.eq.s32.totalorder %s16, 0
      %p104 = por %p102, %p103
      %p105 = scmp.ne.s32.totalorder %s94, %s97
      %p106 = scmp.eq.s32.totalorder %s21, 1
      %p107 = por %p105, %p106
      %p108 = scmp.ne.s32.totalorder %s97, %s98
      %p109 = scmp.eq.s32.totalorder %s21, 0
      %p110 = por %p108, %p109
      %p111 = scmp.ne.s32.totalorder %s97, %s98
      %p112 = scmp.eq.s32.totalorder %s22, 1
      %p113 = por %p111, %p112
      %p115 = scmp.ne.s32.totalorder %s98, %s114
      %p116 = scmp.eq.s32.totalorder %s22, 0
      %p117 = por %p115, %p116
      %p118 = scmp.le.s32.totalorder 1, %s16
      %p119 = scmp.lt.s32.totalorder %s16, 3
      %p120 = pnand %p118, %p119
      %p121 = pneg %p120
      // Predicated region
      $region9: #{tpu_custom_call.1} parent=5 // pred_check
        _
      $region10: #{tpu_custom_call.1} parent=5 // pred_check_branch
        %123 = sbr.rel (%p120) target = $region12
      $region11: #{tpu_custom_call.1} parent=5 // pred_region
        %s124 = ssub.s32 %s16, 1
        // Predicated region
        $region13: #{tpu_custom_call.1} parent=11 // pred_check
          %p125 = pneg %p63
        $region14: #{tpu_custom_call.1} parent=11 // pred_check_branch
          %127 = sbr.rel (%p125) target = $region16
        $region15: #{tpu_custom_call.1} parent=11 // pred_region
          %s129 = ssub.s32 1024, 1024
          %130 = vsyncadd [#allocation10], %s129
          %s131 = sshll.u32 [#allocation9], 4
          %s132 = int_to_ptr.vmem [resolvable:$true] %s131
          %137 = dma.hbm_to_vmem [thread:$0]  %s1, 1024, %s132, [#allocation10], 256, 256, 16
        $region16: #{tpu_custom_call.1} parent=11 // pred_fallthru
          _
        // Predicated region
        $region17: #{tpu_custom_call.1} parent=11 // pred_check
          %p138 = pneg %p84
        $region18: #{tpu_custom_call.1} parent=11 // pred_check_branch
          %140 = sbr.rel (%p138) target = $region20
        $region19: #{tpu_custom_call.1} parent=11 // pred_region
          %s142 = ssub.s32 1024, 1024
          %143 = vsyncadd [#allocation10], %s142
          %s144 = sshll.u32 [#allocation11], 4
          %s145 = int_to_ptr.vmem [resolvable:$true] %s144
          %150 = dma.hbm_to_vmem [thread:$0]  %s2, 1024, %s145, [#allocation10], 64, 64, 4
        $region20: #{tpu_custom_call.1} parent=11 // pred_fallthru
          _
      $region12: #{tpu_custom_call.1} parent=5 // pred_fallthru
        _
      %p151 = scmp.lt.s32.totalorder %s16, 2
      // Predicated region
      $region21: #{tpu_custom_call.1} parent=5 // pred_check
        %p152 = pneg %p151
      $region22: #{tpu_custom_call.1} parent=5 // pred_check_branch
        %154 = sbr.rel (%p152) target = $region24
      $region23: #{tpu_custom_call.1} parent=5 // pred_region
        // Predicated region
        $region25: #{tpu_custom_call.1} parent=23 // pred_check
          %p155 = pneg %p36
        $region26: #{tpu_custom_call.1} parent=23 // pred_check_branch
          %157 = sbr.rel (%p155) target = $region28
        $region27: #{tpu_custom_call.1} parent=23 // pred_region
          %s158 = sand.u32 %s26, 1
          %s159 = scalar_lea.sflag [#allocation7], %s158
          %s160 = sand.u32 %s26, 1
          %s161 = smul.addr %s160, 4
          %s162 = scalar_lea.vmem [#allocation6], %s161
          %s164 = ssub.s32 64, 64
          %165 = vsyncadd %s159, %s164
          %s166 = smul.addr %s16, 64
          %s167 = scalar_lea.hbm %s0, %s166
          %s169 = sshll.u32 %s162, 4
          %s170 = int_to_ptr.vmem [resolvable:$true] %s169
          %172 = dma.hbm_to_vmem [thread:$0]  %s167, 64, %s170, %s159
        $region28: #{tpu_custom_call.1} parent=23 // pred_fallthru
          _
      $region24: #{tpu_custom_call.1} parent=5 // pred_fallthru
        _
      %p173 = scmp.le.s32.totalorder 1, %s16
      %p174 = scmp.lt.s32.totalorder %s16, 3
      %p175 = pnand %p173, %p174
      %p176 = pneg %p175
      // Predicated region
      $region29: #{tpu_custom_call.1} parent=5 // pred_check
        _
      $region30: #{tpu_custom_call.1} parent=5 // pred_check_branch
        %178 = sbr.rel (%p175) target = $region32
      $region31: #{tpu_custom_call.1} parent=5 // pred_region
        %s179 = ssub.s32 %s16, 1
        %s180 = sand.u32 %s29, 1
        %s181 = scalar_lea.sflag [#allocation7], %s180
        %s182 = sand.u32 %s29, 1
        %s183 = smul.addr %s182, 4
        %s184 = scalar_lea.vmem [#allocation6], %s183
        // Predicated region
        $region33: #{tpu_custom_call.1} parent=31 // pred_check
          %p185 = pneg %p42
        $region34: #{tpu_custom_call.1} parent=31 // pred_check_branch
          %187 = sbr.rel (%p185) target = $region36
        $region35: #{tpu_custom_call.1} parent=31 // pred_region
          %188 = dma.done %s181, 64
        $region36: #{tpu_custom_call.1} parent=31 // pred_fallthru
          _
        // Predicated region
        $region37: #{tpu_custom_call.1} parent=31 // pred_check
          %p189 = pneg %p63
        $region38: #{tpu_custom_call.1} parent=31 // pred_check_branch
          %191 = sbr.rel (%p189) target = $region40
        $region39: #{tpu_custom_call.1} parent=31 // pred_region
          %192 = dma.done [#allocation10], 1024
        $region40: #{tpu_custom_call.1} parent=31 // pred_fallthru
          _
        // Predicated region
        $region41: #{tpu_custom_call.1} parent=31 // pred_check
          %p193 = pneg %p84
        $region42: #{tpu_custom_call.1} parent=31 // pred_check_branch
          %195 = sbr.rel (%p193) target = $region44
        $region43: #{tpu_custom_call.1} parent=31 // pred_region
          %196 = dma.done [#allocation10], 1024
        $region44: #{tpu_custom_call.1} parent=31 // pred_fallthru
          _
        %s197 = sand.u32 %s29, 1
        %s198 = scalar_lea.sflag [#allocation7], %s197
        %s199 = sand.u32 %s29, 1
        %s200 = smul.addr %s199, 4
        %s201 = scalar_lea.vmem [#allocation6], %s200
        %p202 = pneg %p42
        %p203 = pneg %p39
        %p204 = pneg %p63
        %p205 = pneg %p60
        %p206 = pneg %p84
        %p207 = pneg %p81
        %p208 = pneg %p110
        %p209 = pneg %p107
        %s210 = sand.u32 %s97, 1
        %s211 = scalar_lea.sflag [#allocation8], %s210
        %s212 = sand.u32 %s97, 1
        %s213 = smul.addr %s212, 4
        %s214 = scalar_lea.vmem [#allocation12], %s213
        %v216 = vld [vmem:[%s184] sm:$0xf]
        %v217 = vld [vmem:[#allocation9] sm:$0xff]
        %v218 = vld [vmem:[#allocation9 + $0x8] sm:$0xff]
        %v219 = vld [vmem:[#allocation9 + $0x10] sm:$0xff]
        %v220 = vld [vmem:[#allocation9 + $0x18] sm:$0xff]
        %v221 = vld [vmem:[#allocation9 + $0x20] sm:$0xff]
        %v222 = vld [vmem:[#allocation9 + $0x28] sm:$0xff]
        %v223 = vld [vmem:[#allocation9 + $0x30] sm:$0xff]
        %v224 = vld [vmem:[#allocation9 + $0x38] sm:$0xff]
        %v233 = vunpack.c.l.b16 %v217
        %v234 = vunpack.c.h.b16 %v217
        %v235 = vunpack.c.l.b16 %v218
        %v236 = vunpack.c.h.b16 %v218
        %v237 = vunpack.c.l.b16 %v219
        %v238 = vunpack.c.h.b16 %v219
        %v239 = vunpack.c.l.b16 %v220
        %v240 = vunpack.c.h.b16 %v220
        %v241 = vunpack.c.l.b16 %v221
        %v242 = vunpack.c.h.b16 %v221
        %v243 = vunpack.c.l.b16 %v222
        %v244 = vunpack.c.h.b16 %v222
        %v245 = vunpack.c.l.b16 %v223
        %v246 = vunpack.c.h.b16 %v223
        %v247 = vunpack.c.l.b16 %v224
        %v248 = vunpack.c.h.b16 %v224
        %v249 = vpack.c.b16 %v237, %v233
        %v250 = vpack.c.b16 %v238, %v234
        %v251 = vpack.c.b16 %v239, %v235
        %v252 = vpack.c.b16 %v240, %v236
        %v253 = vpack.c.b16 %v245, %v241
        %v254 = vpack.c.b16 %v246, %v242
        %v255 = vpack.c.b16 %v247, %v243
        %v256 = vpack.c.b16 %v248, %v244
        %vm265 = vcmask 261120
        %v267 = vsel %vm265, %v216, 0
        %269 = vmatprep.subr.bf16.mxu0 %v250
        %270 = vmatpush1.bf16.msra.mxu0 %v249
        %271 = vmatprep.subr.bf16.mxu0 %v254
        %272 = vmatpush1.bf16.msra.mxu0 %v253
        %273 = vmatprep.subr.bf16.mxu0 0
        %274 = vmatpush1.bf16.msra.mxu0 0
        %275 = vmatprep.subr.bf16.mxu0 0
        %276 = vmatpush1.bf16.msra.mxu0 0
        %277 = vmatprep.subr.bf16.mxu0 0
        %278 = vmatpush1.bf16.msra.mxu0 0
        %279 = vmatprep.subr.bf16.mxu0 0
        %280 = vmatpush1.bf16.msra.mxu0 0
        %281 = vmatprep.subr.bf16.mxu0 0
        %282 = vmatpush1.bf16.msra.mxu0 0
        %283 = vmatprep.subr.bf16.mxu0 0
        %284 = vmatpush1.bf16.msra.mxu0 0
        %285 = vmatprep.subr.bf16.mxu0 0
        %286 = vmatpush1.bf16.msra.mxu0 0
        %287 = vmatprep.subr.bf16.mxu0 0
        %288 = vmatpush1.bf16.msra.mxu0 0
        %289 = vmatprep.subr.bf16.mxu0 0
        %290 = vmatpush1.bf16.msra.mxu0 0
        %291 = vmatprep.subr.bf16.mxu0 0
        %292 = vmatpush1.bf16.msra.mxu0 0
        %293 = vmatprep.subr.bf16.mxu0 0
        %294 = vmatpush1.bf16.msra.mxu0 0
        %295 = vmatprep.subr.bf16.mxu0 0
        %296 = vmatpush1.bf16.msra.mxu0 0
        %297 = vmatprep.subr.bf16.mxu0 0
        %298 = vmatpush1.bf16.msra.mxu0 0
        %299 = vmatprep.subr.bf16.mxu0 0
        %300 = vmatpush1.bf16.msra.mxu0 0
        %301 = vmatprep.mubr.bf16.mxu0 0
        %302 = vmatmul.mubr.bf16.gmra.mrb[0].mxu0 %v267
        %v303 = vpop.f32.mrb[0].mxu0
        %v304 = vadd.f32 0.0, %v303
        %v305 = vpop.f32.mrb[0].mxu0
        %v306 = vadd.f32 0.0, %v305
        %v307 = vpop.f32.mrb[0].mxu0
        %v308 = vpop.f32.mrb[0].mxu0
        %309 = vdwg.mxu0
        %310 = vmatprep.subr.bf16.mxu0 %v252
        %311 = vmatpush1.bf16.msra.mxu0 %v251
        %312 = vmatprep.subr.bf16.mxu0 %v256
        %313 = vmatpush1.bf16.msra.mxu0 %v255
        %314 = vmatprep.subr.bf16.mxu0 0
        %315 = vmatpush1.bf16.msra.mxu0 0
        %316 = vmatprep.subr.bf16.mxu0 0
        %317 = vmatpush1.bf16.msra.mxu0 0
        %318 = vmatprep.subr.bf16.mxu0 0
        %319 = vmatpush1.bf16.msra.mxu0 0
        %320 = vmatprep.subr.bf16.mxu0 0
        %321 = vmatpush1.bf16.msra.mxu0 0
        %322 = vmatprep.subr.bf16.mxu0 0
        %323 = vmatpush1.bf16.msra.mxu0 0
        %324 = vmatprep.subr.bf16.mxu0 0
        %325 = vmatpush1.bf16.msra.mxu0 0
        %326 = vmatprep.subr.bf16.mxu0 0
        %327 = vmatpush1.bf16.msra.mxu0 0
        %328 = vmatprep.subr.bf16.mxu0 0
        %329 = vmatpush1.bf16.msra.mxu0 0
        %330 = vmatprep.subr.bf16.mxu0 0
        %331 = vmatpush1.bf16.msra.mxu0 0
        %332 = vmatprep.subr.bf16.mxu0 0
        %333 = vmatpush1.bf16.msra.mxu0 0
        %334 = vmatprep.subr.bf16.mxu0 0
        %335 = vmatpush1.bf16.msra.mxu0 0
        %336 = vmatprep.subr.bf16.mxu0 0
        %337 = vmatpush1.bf16.msra.mxu0 0
        %338 = vmatprep.subr.bf16.mxu0 0
        %339 = vmatpush1.bf16.msra.mxu0 0
        %340 = vmatprep.subr.bf16.mxu0 0
        %341 = vmatpush1.bf16.msra.mxu0 0
        %342 = vmatprep.mubr.bf16.mxu0 0
        %343 = vmatmul.mubr.bf16.gmra.mrb[0].mxu0 %v267
        %v344 = vpop.f32.mrb[0].mxu0
        %v345 = vadd.f32 0.0, %v344
        %v346 = vpop.f32.mrb[0].mxu0
        %v347 = vadd.f32 0.0, %v346
        %v348 = vpop.f32.mrb[0].mxu0
        %v349 = vpop.f32.mrb[0].mxu0
        %350 = vdwg.mxu0
        %v351 = vxor.u32 %v347, 2147483648
        %v352 = vmul.f32 %v351, 1.442695
        %v353 = vpow.pop %v352
        %v354 = vadd.f32 %v353, 1.0
        %v355 = vrcp.pop %v354
        %v356 = vmul.f32 1.0, %v355
        %v357 = vmul.f32 %v347, %v356
        %v358 = vpack.c.bf16 %v357, %v357
        %v359 = vmul.f32 %v304, 0.17677669
        %v360 = vpack.c.bf16 %v359, %v359
        %vm361 = vcmask 257024
        %362 = vst.msk [vmem:[#allocation2] sm:$0xf] %vm361, %v360
        %v363 = vpack.c.bf16 %v306, %v306
        %364 = vst.msk [vmem:[#allocation3] sm:$0xf] %vm361, %v363
        %v365 = vpack.c.bf16 %v345, %v345
        %366 = vst.msk [vmem:[#allocation4] sm:$0xf] %vm361, %v365
        %v368 = vunpack.c.l.b16 %v360
        %v369 = vpack.c.b16 %v368, %v368
        %370 = vrot.lane.b32.xlu0 %v369, 96
        %v371 = vpop.permute.xlu0 %370
        %s373 = scalar_lea.vmem [#allocation2], 4
        %374 = vst.msk [vmem:[%s373] sm:$0xf] %vm361, %v371
        %v376 = vunpack.c.l.b16 %v363
        %v377 = vpack.c.b16 %v376, %v376
        %378 = vrot.lane.b32.xlu0 %v377, 96
        %v379 = vpop.permute.xlu0 %378
        %s381 = scalar_lea.vmem [#allocation3], 4
        %382 = vst.msk [vmem:[%s381] sm:$0xf] %vm361, %v379
        %v384 = vunpack.c.l.b16 %v365
        %v385 = vpack.c.b16 %v384, %v384
        %386 = vrot.lane.b32.xlu0 %v385, 96
        %v387 = vpop.permute.xlu0 %386
        %s389 = scalar_lea.vmem [#allocation4], 4
        %390 = vst.msk [vmem:[%s389] sm:$0xf] %vm361, %v387
        %391 = vrot.lane.b32.xlu0 %v369, 64
        %v392 = vpop.permute.xlu0 %391
        %s394 = scalar_lea.vmem [#allocation2], 8
        %395 = vst.msk [vmem:[%s394] sm:$0xf] %vm361, %v392
        %396 = vrot.lane.b32.xlu0 %v377, 64
        %v397 = vpop.permute.xlu0 %396
        %s399 = scalar_lea.vmem [#allocation3], 8
        %400 = vst.msk [vmem:[%s399] sm:$0xf] %vm361, %v397
        %401 = vrot.lane.b32.xlu0 %v385, 64
        %v402 = vpop.permute.xlu0 %401
        %s404 = scalar_lea.vmem [#allocation4], 8
        %405 = vst.msk [vmem:[%s404] sm:$0xf] %vm361, %v402
        %406 = vrot.lane.b32.xlu0 %v369, 32
        %v407 = vpop.permute.xlu0 %406
        %s409 = scalar_lea.vmem [#allocation2], 12
        %410 = vst.msk [vmem:[%s409] sm:$0xf] %vm361, %v407
        %411 = vrot.lane.b32.xlu0 %v377, 32
        %v412 = vpop.permute.xlu0 %411
        %s414 = scalar_lea.vmem [#allocation3], 12
        %415 = vst.msk [vmem:[%s414] sm:$0xf] %vm361, %v412
        %416 = vrot.lane.b32.xlu0 %v385, 32
        %v417 = vpop.permute.xlu0 %416
        %s419 = scalar_lea.vmem [#allocation4], 12
        %420 = vst.msk [vmem:[%s419] sm:$0xf] %vm361, %v417
        %v421 = vld [vmem:[#allocation2] sm:$0xf]
        %v422 = vld [vmem:[#allocation2 + $0x4] sm:$0xf]
        %v423 = vld [vmem:[#allocation2 + $0x8] sm:$0xf]
        %v424 = vld [vmem:[#allocation2 + $0xc] sm:$0xf]
        %v425 = vld [vmem:[#allocation3] sm:$0xf]
        %v426 = vld [vmem:[#allocation3 + $0x4] sm:$0xf]
        %v427 = vld [vmem:[#allocation3 + $0x8] sm:$0xf]
        %v428 = vld [vmem:[#allocation3 + $0xc] sm:$0xf]
        %v429 = vld [vmem:[#allocation4] sm:$0xf]
        %v430 = vld [vmem:[#allocation4 + $0x4] sm:$0xf]
        %v431 = vld [vmem:[#allocation4 + $0x8] sm:$0xf]
        %v432 = vld [vmem:[#allocation4 + $0xc] sm:$0xf]
        %v434 = vsel %vm265, %v421, 0
        %v437 = vsel %vm265, %v425, 0
        %439 = vmatprep.subr.bf16.mxu0 0
        %440 = vmatpush1.bf16.xpose.msra.mxu0 %v437
        %441 = vmatprep.subr.bf16.mxu0 0
        %442 = vmatpush1.bf16.xpose.msra.mxu0 0
        %443 = vmatprep.subr.bf16.mxu0 0
        %444 = vmatpush1.bf16.xpose.msra.mxu0 0
        %445 = vmatprep.subr.bf16.mxu0 0
        %446 = vmatpush1.bf16.xpose.msra.mxu0 0
        %447 = vmatprep.subr.bf16.mxu0 0
        %448 = vmatpush1.bf16.xpose.msra.mxu0 0
        %449 = vmatprep.subr.bf16.mxu0 0
        %450 = vmatpush1.bf16.xpose.msra.mxu0 0
        %451 = vmatprep.subr.bf16.mxu0 0
        %452 = vmatpush1.bf16.xpose.msra.mxu0 0
        %453 = vmatprep.subr.bf16.mxu0 0
        %454 = vmatpush1.bf16.xpose.msra.mxu0 0
        %455 = vmatprep.subr.bf16.mxu0 0
        %456 = vmatpush1.bf16.xpose.msra.mxu0 0
        %457 = vmatprep.subr.bf16.mxu0 0
        %458 = vmatpush1.bf16.xpose.msra.mxu0 0
        %459 = vmatprep.subr.bf16.mxu0 0
        %460 = vmatpush1.bf16.xpose.msra.mxu0 0
        %461 = vmatprep.subr.bf16.mxu0 0
        %462 = vmatpush1.bf16.xpose.msra.mxu0 0
        %463 = vmatprep.subr.bf16.mxu0 0
        %464 = vmatpush1.bf16.xpose.msra.mxu0 0
        %465 = vmatprep.subr.bf16.mxu0 0
        %466 = vmatpush1.bf16.xpose.msra.mxu0 0
        %467 = vmatprep.subr.bf16.mxu0 0
        %468 = vmatpush1.bf16.xpose.msra.mxu0 0
        %469 = vmatprep.subr.bf16.mxu0 0
        %470 = vmatpush1.bf16.xpose.msra.mxu0 0
        %471 = vmatprep.mubr.bf16.mxu0 0
        %472 = vmatmul.mubr.bf16.gmra.mrb[0].mxu0 %v434
        %v473 = vpop.f32.mrb[0].mxu0
        %v474 = vadd.f32 0.0, %v473
        %v475 = vpop.f32.mrb[0].mxu0
        %v476 = vpop.f32.mrb[0].mxu0
        %v477 = vpop.f32.mrb[0].mxu0
        %478 = vdwg.mxu0
        %v480 = vsel %vm265, %v422, 0
        %v483 = vsel %vm265, %v426, 0
        %485 = vmatprep.subr.bf16.mxu0 0
        %486 = vmatpush1.bf16.xpose.msra.mxu0 %v483
        %487 = vmatprep.subr.bf16.mxu0 0
        %488 = vmatpush1.bf16.xpose.msra.mxu0 0
        %489 = vmatprep.subr.bf16.mxu0 0
        %490 = vmatpush1.bf16.xpose.msra.mxu0 0
        %491 = vmatprep.subr.bf16.mxu0 0
        %492 = vmatpush1.bf16.xpose.msra.mxu0 0
        %493 = vmatprep.subr.bf16.mxu0 0
        %494 = vmatpush1.bf16.xpose.msra.mxu0 0
        %495 = vmatprep.subr.bf16.mxu0 0
        %496 = vmatpush1.bf16.xpose.msra.mxu0 0
        %497 = vmatprep.subr.bf16.mxu0 0
        %498 = vmatpush1.bf16.xpose.msra.mxu0 0
        %499 = vmatprep.subr.bf16.mxu0 0
        %500 = vmatpush1.bf16.xpose.msra.mxu0 0
        %501 = vmatprep.subr.bf16.mxu0 0
        %502 = vmatpush1.bf16.xpose.msra.mxu0 0
        %503 = vmatprep.subr.bf16.mxu0 0
        %504 = vmatpush1.bf16.xpose.msra.mxu0 0
        %505 = vmatprep.subr.bf16.mxu0 0
        %506 = vmatpush1.bf16.xpose.msra.mxu0 0
        %507 = vmatprep.subr.bf16.mxu0 0
        %508 = vmatpush1.bf16.xpose.msra.mxu0 0
        %509 = vmatprep.subr.bf16.mxu0 0
        %510 = vmatpush1.bf16.xpose.msra.mxu0 0
        %511 = vmatprep.subr.bf16.mxu0 0
        %512 = vmatpush1.bf16.xpose.msra.mxu0 0
        %513 = vmatprep.subr.bf16.mxu0 0
        %514 = vmatpush1.bf16.xpose.msra.mxu0 0
        %515 = vmatprep.subr.bf16.mxu0 0
        %516 = vmatpush1.bf16.xpose.msra.mxu0 0
        %517 = vmatprep.mubr.bf16.mxu0 0
        %518 = vmatmul.mubr.bf16.gmra.mrb[0].mxu0 %v480
        %v519 = vpop.f32.mrb[0].mxu0
        %v520 = vadd.f32 0.0, %v519
        %v521 = vpop.f32.mrb[0].mxu0
        %v522 = vpop.f32.mrb[0].mxu0
        %v523 = vpop.f32.mrb[0].mxu0
        %524 = vdwg.mxu0
        %v526 = vsel %vm265, %v423, 0
        %v529 = vsel %vm265, %v427, 0
        %531 = vmatprep.subr.bf16.mxu0 0
        %532 = vmatpush1.bf16.xpose.msra.mxu0 %v529
        %533 = vmatprep.subr.bf16.mxu0 0
        %534 = vmatpush1.bf16.xpose.msra.mxu0 0
        %535 = vmatprep.subr.bf16.mxu0 0
        %536 = vmatpush1.bf16.xpose.msra.mxu0 0
        %537 = vmatprep.subr.bf16.mxu0 0
        %538 = vmatpush1.bf16.xpose.msra.mxu0 0
        %539 = vmatprep.subr.bf16.mxu0 0
        %540 = vmatpush1.bf16.xpose.msra.mxu0 0
        %541 = vmatprep.subr.bf16.mxu0 0
        %542 = vmatpush1.bf16.xpose.msra.mxu0 0
        %543 = vmatprep.subr.bf16.mxu0 0
        %544 = vmatpush1.bf16.xpose.msra.mxu0 0
        %545 = vmatprep.subr.bf16.mxu0 0
        %546 = vmatpush1.bf16.xpose.msra.mxu0 0
        %547 = vmatprep.subr.bf16.mxu0 0
        %548 = vmatpush1.bf16.xpose.msra.mxu0 0
        %549 = vmatprep.subr.bf16.mxu0 0
        %550 = vmatpush1.bf16.xpose.msra.mxu0 0
        %551 = vmatprep.subr.bf16.mxu0 0
        %552 = vmatpush1.bf16.xpose.msra.mxu0 0
        %553 = vmatprep.subr.bf16.mxu0 0
        %554 = vmatpush1.bf16.xpose.msra.mxu0 0
        %555 = vmatprep.subr.bf16.mxu0 0
        %556 = vmatpush1.bf16.xpose.msra.mxu0 0
        %557 = vmatprep.subr.bf16.mxu0 0
        %558 = vmatpush1.bf16.xpose.msra.mxu0 0
        %559 = vmatprep.subr.bf16.mxu0 0
        %560 = vmatpush1.bf16.xpose.msra.mxu0 0
        %561 = vmatprep.subr.bf16.mxu0 0
        %562 = vmatpush1.bf16.xpose.msra.mxu0 0
        %563 = vmatprep.mubr.bf16.mxu0 0
        %564 = vmatmul.mubr.bf16.gmra.mrb[0].mxu0 %v526
        %v565 = vpop.f32.mrb[0].mxu0
        %v566 = vadd.f32 0.0, %v565
        %v567 = vpop.f32.mrb[0].mxu0
        %v568 = vpop.f32.mrb[0].mxu0
        %v569 = vpop.f32.mrb[0].mxu0
        %570 = vdwg.mxu0
        %v572 = vsel %vm265, %v424, 0
        %v575 = vsel %vm265, %v428, 0
        %577 = vmatprep.subr.bf16.mxu0 0
        %578 = vmatpush1.bf16.xpose.msra.mxu0 %v575
        %579 = vmatprep.subr.bf16.mxu0 0
        %580 = vmatpush1.bf16.xpose.msra.mxu0 0
        %581 = vmatprep.subr.bf16.mxu0 0
        %582 = vmatpush1.bf16.xpose.msra.mxu0 0
        %583 = vmatprep.subr.bf16.mxu0 0
        %584 = vmatpush1.bf16.xpose.msra.mxu0 0
        %585 = vmatprep.subr.bf16.mxu0 0
        %586 = vmatpush1.bf16.xpose.msra.mxu0 0
        %587 = vmatprep.subr.bf16.mxu0 0
        %588 = vmatpush1.bf16.xpose.msra.mxu0 0
        %589 = vmatprep.subr.bf16.mxu0 0
        %590 = vmatpush1.bf16.xpose.msra.mxu0 0
        %591 = vmatprep.subr.bf16.mxu0 0
        %592 = vmatpush1.bf16.xpose.msra.mxu0 0
        %593 = vmatprep.subr.bf16.mxu0 0
        %594 = vmatpush1.bf16.xpose.msra.mxu0 0
        %595 = vmatprep.subr.bf16.mxu0 0
        %596 = vmatpush1.bf16.xpose.msra.mxu0 0
        %597 = vmatprep.subr.bf16.mxu0 0
        %598 = vmatpush1.bf16.xpose.msra.mxu0 0
        %599 = vmatprep.subr.bf16.mxu0 0
        %600 = vmatpush1.bf16.xpose.msra.mxu0 0
        %601 = vmatprep.subr.bf16.mxu0 0
        %602 = vmatpush1.bf16.xpose.msra.mxu0 0
        %603 = vmatprep.subr.bf16.mxu0 0
        %604 = vmatpush1.bf16.xpose.msra.mxu0 0
        %605 = vmatprep.subr.bf16.mxu0 0
        %606 = vmatpush1.bf16.xpose.msra.mxu0 0
        %607 = vmatprep.subr.bf16.mxu0 0
        %608 = vmatpush1.bf16.xpose.msra.mxu0 0
        %609 = vmatprep.mubr.bf16.mxu0 0
        %610 = vmatmul.mubr.bf16.gmra.mrb[0].mxu0 %v572
        %v611 = vpop.f32.mrb[0].mxu0
        %v612 = vadd.f32 0.0, %v611
        %v613 = vpop.f32.mrb[0].mxu0
        %v614 = vpop.f32.mrb[0].mxu0
        %v615 = vpop.f32.mrb[0].mxu0
        %616 = vdwg.mxu0
        %vm617 = vcmask 64512
        %v618 = vsel %vm617, %v474, -inf
        %619 = vmax.xlane.f32.xlu0 %v618
        %v620 = vpop.xlane.xlu0 %619
        %v621 = vsel %vm617, %v520, -inf
        %622 = vmax.xlane.f32.xlu0 %v621
        %v623 = vpop.xlane.xlu0 %622
        %v624 = vsel %vm617, %v566, -inf
        %625 = vmax.xlane.f32.xlu0 %v624
        %v626 = vpop.xlane.xlu0 %625
        %v627 = vsel %vm617, %v612, -inf
        %628 = vmax.xlane.f32.xlu0 %v627
        %v629 = vpop.xlane.xlu0 %628
        %v630 = vsub.f32 %v474, %v620
        %v631 = vsub.f32 %v520, %v623
        %v632 = vsub.f32 %v566, %v626
        %v633 = vsub.f32 %v612, %v629
        %v634 = vmul.f32 %v630, 1.442695
        %v635 = vpow.pop %v634
        %v636 = vmul.f32 %v631, 1.442695
        %v637 = vpow.pop %v636
        %v638 = vmul.f32 %v632, 1.442695
        %v639 = vpow.pop %v638
        %v640 = vmul.f32 %v633, 1.442695
        %v641 = vpow.pop %v640
        %v642 = vsel %vm617, %v635, 0.0
        %643 = vadd.xlane.f32.xlu0 %v642
        %v644 = vpop.xlane.xlu0 %643
        %v645 = vsel %vm617, %v637, 0.0
        %646 = vadd.xlane.f32.xlu0 %v645
        %v647 = vpop.xlane.xlu0 %646
        %v648 = vsel %vm617, %v639, 0.0
        %649 = vadd.xlane.f32.xlu0 %v648
        %v650 = vpop.xlane.xlu0 %649
        %v651 = vsel %vm617, %v641, 0.0
        %652 = vadd.xlane.f32.xlu0 %v651
        %v653 = vpop.xlane.xlu0 %652
        %v654 = vpack.c.bf16 %v635, %v635
        %v655 = vpack.c.bf16 %v637, %v637
        %v656 = vpack.c.bf16 %v639, %v639
        %v657 = vpack.c.bf16 %v641, %v641
        %v659 = vsel %vm617, %v654, 0
        %vm661 = vcmask 1043456
        %v663 = vsel %vm661, %v429, 0
        %665 = vmatprep.subr.bf16.mxu0 0
        %666 = vmatpush1.bf16.msra.mxu0 %v663
        %667 = vmatprep.subr.bf16.mxu0 0
        %668 = vmatpush1.bf16.msra.mxu0 0
        %669 = vmatprep.subr.bf16.mxu0 0
        %670 = vmatpush1.bf16.msra.mxu0 0
        %671 = vmatprep.subr.bf16.mxu0 0
        %672 = vmatpush1.bf16.msra.mxu0 0
        %673 = vmatprep.subr.bf16.mxu0 0
        %674 = vmatpush1.bf16.msra.mxu0 0
        %675 = vmatprep.subr.bf16.mxu0 0
        %676 = vmatpush1.bf16.msra.mxu0 0
        %677 = vmatprep.subr.bf16.mxu0 0
        %678 = vmatpush1.bf16.msra.mxu0 0
        %679 = vmatprep.subr.bf16.mxu0 0
        %680 = vmatpush1.bf16.msra.mxu0 0
        %681 = vmatprep.subr.bf16.mxu0 0
        %682 = vmatpush1.bf16.msra.mxu0 0
        %683 = vmatprep.subr.bf16.mxu0 0
        %684 = vmatpush1.bf16.msra.mxu0 0
        %685 = vmatprep.subr.bf16.mxu0 0
        %686 = vmatpush1.bf16.msra.mxu0 0
        %687 = vmatprep.subr.bf16.mxu0 0
        %688 = vmatpush1.bf16.msra.mxu0 0
        %689 = vmatprep.subr.bf16.mxu0 0
        %690 = vmatpush1.bf16.msra.mxu0 0
        %691 = vmatprep.subr.bf16.mxu0 0
        %692 = vmatpush1.bf16.msra.mxu0 0
        %693 = vmatprep.subr.bf16.mxu0 0
        %694 = vmatpush1.bf16.msra.mxu0 0
        %695 = vmatprep.subr.bf16.mxu0 0
        %696 = vmatpush1.bf16.msra.mxu0 0
        %697 = vmatprep.mubr.bf16.mxu0 0
        %698 = vmatmul.mubr.bf16.gmra.mrb[0].mxu0 %v659
        %v699 = vpop.f32.mrb[0].mxu0
        %v700 = vadd.f32 0.0, %v699
        %v701 = vpop.f32.mrb[0].mxu0
        %v702 = vpop.f32.mrb[0].mxu0
        %v703 = vpop.f32.mrb[0].mxu0
        %704 = vdwg.mxu0
        %v706 = vsel %vm617, %v655, 0
        %v709 = vsel %vm661, %v430, 0
        %711 = vmatprep.subr.bf16.mxu0 0
        %712 = vmatpush1.bf16.msra.mxu0 %v709
        %713 = vmatprep.subr.bf16.mxu0 0
        %714 = vmatpush1.bf16.msra.mxu0 0
        %715 = vmatprep.subr.bf16.mxu0 0
        %716 = vmatpush1.bf16.msra.mxu0 0
        %717 = vmatprep.subr.bf16.mxu0 0
        %718 = vmatpush1.bf16.msra.mxu0 0
        %719 = vmatprep.subr.bf16.mxu0 0
        %720 = vmatpush1.bf16.msra.mxu0 0
        %721 = vmatprep.subr.bf16.mxu0 0
        %722 = vmatpush1.bf16.msra.mxu0 0
        %723 = vmatprep.subr.bf16.mxu0 0
        %724 = vmatpush1.bf16.msra.mxu0 0
        %725 = vmatprep.subr.bf16.mxu0 0
        %726 = vmatpush1.bf16.msra.mxu0 0
        %727 = vmatprep.subr.bf16.mxu0 0
        %728 = vmatpush1.bf16.msra.mxu0 0
        %729 = vmatprep.subr.bf16.mxu0 0
        %730 = vmatpush1.bf16.msra.mxu0 0
        %731 = vmatprep.subr.bf16.mxu0 0
        %732 = vmatpush1.bf16.msra.mxu0 0
        %733 = vmatprep.subr.bf16.mxu0 0
        %734 = vmatpush1.bf16.msra.mxu0 0
        %735 = vmatprep.subr.bf16.mxu0 0
        %736 = vmatpush1.bf16.msra.mxu0 0
        %737 = vmatprep.subr.bf16.mxu0 0
        %738 = vmatpush1.bf16.msra.mxu0 0
        %739 = vmatprep.subr.bf16.mxu0 0
        %740 = vmatpush1.bf16.msra.mxu0 0
        %741 = vmatprep.subr.bf16.mxu0 0
        %742 = vmatpush1.bf16.msra.mxu0 0
        %743 = vmatprep.mubr.bf16.mxu0 0
        %744 = vmatmul.mubr.bf16.gmra.mrb[0].mxu0 %v706
        %v745 = vpop.f32.mrb[0].mxu0
        %v746 = vadd.f32 0.0, %v745
        %v747 = vpop.f32.mrb[0].mxu0
        %v748 = vpop.f32.mrb[0].mxu0
        %v749 = vpop.f32.mrb[0].mxu0
        %750 = vdwg.mxu0
        %v752 = vsel %vm617, %v656, 0
        %v755 = vsel %vm661, %v431, 0
        %757 = vmatprep.subr.bf16.mxu0 0
        %758 = vmatpush1.bf16.msra.mxu0 %v755
        %759 = vmatprep.subr.bf16.mxu0 0
        %760 = vmatpush1.bf16.msra.mxu0 0
        %761 = vmatprep.subr.bf16.mxu0 0
        %762 = vmatpush1.bf16.msra.mxu0 0
        %763 = vmatprep.subr.bf16.mxu0 0
        %764 = vmatpush1.bf16.msra.mxu0 0
        %765 = vmatprep.subr.bf16.mxu0 0
        %766 = vmatpush1.bf16.msra.mxu0 0
        %767 = vmatprep.subr.bf16.mxu0 0
        %768 = vmatpush1.bf16.msra.mxu0 0
        %769 = vmatprep.subr.bf16.mxu0 0
        %770 = vmatpush1.bf16.msra.mxu0 0
        %771 = vmatprep.subr.bf16.mxu0 0
        %772 = vmatpush1.bf16.msra.mxu0 0
        %773 = vmatprep.subr.bf16.mxu0 0
        %774 = vmatpush1.bf16.msra.mxu0 0
        %775 = vmatprep.subr.bf16.mxu0 0
        %776 = vmatpush1.bf16.msra.mxu0 0
        %777 = vmatprep.subr.bf16.mxu0 0
        %778 = vmatpush1.bf16.msra.mxu0 0
        %779 = vmatprep.subr.bf16.mxu0 0
        %780 = vmatpush1.bf16.msra.mxu0 0
        %781 = vmatprep.subr.bf16.mxu0 0
        %782 = vmatpush1.bf16.msra.mxu0 0
        %783 = vmatprep.subr.bf16.mxu0 0
        %784 = vmatpush1.bf16.msra.mxu0 0
        %785 = vmatprep.subr.bf16.mxu0 0
        %786 = vmatpush1.bf16.msra.mxu0 0
        %787 = vmatprep.subr.bf16.mxu0 0
        %788 = vmatpush1.bf16.msra.mxu0 0
        %789 = vmatprep.mubr.bf16.mxu0 0
        %790 = vmatmul.mubr.bf16.gmra.mrb[0].mxu0 %v752
        %v791 = vpop.f32.mrb[0].mxu0
        %v792 = vadd.f32 0.0, %v791
        %v793 = vpop.f32.mrb[0].mxu0
        %v794 = vpop.f32.mrb[0].mxu0
        %v795 = vpop.f32.mrb[0].mxu0
        %796 = vdwg.mxu0
        %v798 = vsel %vm617, %v657, 0
        %v801 = vsel %vm661, %v432, 0
        %803 = vmatprep.subr.bf16.mxu0 0
        %804 = vmatpush1.bf16.msra.mxu0 %v801
        %805 = vmatprep.subr.bf16.mxu0 0
        %806 = vmatpush1.bf16.msra.mxu0 0
        %807 = vmatprep.subr.bf16.mxu0 0
        %808 = vmatpush1.bf16.msra.mxu0 0
        %809 = vmatprep.subr.bf16.mxu0 0
        %810 = vmatpush1.bf16.msra.mxu0 0
        %811 = vmatprep.subr.bf16.mxu0 0
        %812 = vmatpush1.bf16.msra.mxu0 0
        %813 = vmatprep.subr.bf16.mxu0 0
        %814 = vmatpush1.bf16.msra.mxu0 0
        %815 = vmatprep.subr.bf16.mxu0 0
        %816 = vmatpush1.bf16.msra.mxu0 0
        %817 = vmatprep.subr.bf16.mxu0 0
        %818 = vmatpush1.bf16.msra.mxu0 0
        %819 = vmatprep.subr.bf16.mxu0 0
        %820 = vmatpush1.bf16.msra.mxu0 0
        %821 = vmatprep.subr.bf16.mxu0 0
        %822 = vmatpush1.bf16.msra.mxu0 0
        %823 = vmatprep.subr.bf16.mxu0 0
        %824 = vmatpush1.bf16.msra.mxu0 0
        %825 = vmatprep.subr.bf16.mxu0 0
        %826 = vmatpush1.bf16.msra.mxu0 0
        %827 = vmatprep.subr.bf16.mxu0 0
        %828 = vmatpush1.bf16.msra.mxu0 0
        %829 = vmatprep.subr.bf16.mxu0 0
        %830 = vmatpush1.bf16.msra.mxu0 0
        %831 = vmatprep.subr.bf16.mxu0 0
        %832 = vmatpush1.bf16.msra.mxu0 0
        %833 = vmatprep.subr.bf16.mxu0 0
        %834 = vmatpush1.bf16.msra.mxu0 0
        %835 = vmatprep.mubr.bf16.mxu0 0
        %836 = vmatmul.mubr.bf16.gmra.mrb[0].mxu0 %v798
        %v837 = vpop.f32.mrb[0].mxu0
        %v838 = vadd.f32 0.0, %v837
        %v839 = vpop.f32.mrb[0].mxu0
        %v840 = vpop.f32.mrb[0].mxu0
        %v841 = vpop.f32.mrb[0].mxu0
        %842 = vdwg.mxu0
        %v843 = vrcp.pop %v644
        %v844 = vrcp.pop %v647
        %v845 = vrcp.pop %v650
        %v846 = vrcp.pop %v653
        %v847 = vmul.f32 %v700, %v843
        %v848 = vmul.f32 %v746, %v844
        %v849 = vmul.f32 %v792, %v845
        %v850 = vmul.f32 %v838, %v846
        %v851 = vpack.c.bf16 %v847, %v847
        %v852 = vmul.bf16 %v851, %v358
        %853 = vst.msk [vmem:[#allocation5] sm:$0xf] %vm361, %v852
        %v854 = vpack.c.bf16 %v848, %v848
        %856 = vrot.lane.b32.xlu0 %v358, 96
        %v857 = vpop.permute.xlu0 %856
        %v859 = vmul.bf16 %v854, %v857
        %v861 = vunpack.c.l.b16 %v859
        %v862 = vpack.c.b16 %v861, %v861
        %863 = vrot.lane.b32.xlu0 %v862, 32
        %v864 = vpop.permute.xlu0 %863
        %vm866 = vcmask 519424
        %867 = vst.msk [vmem:[#allocation5] sm:$0xf] %vm866, %v864
        %v868 = vpack.c.bf16 %v849, %v849
        %869 = vrot.lane.b32.xlu0 %v358, 64
        %v870 = vpop.permute.xlu0 %869
        %v872 = vmul.bf16 %v868, %v870
        %v874 = vunpack.c.l.b16 %v872
        %v875 = vpack.c.b16 %v874, %v874
        %876 = vrot.lane.b32.xlu0 %v875, 64
        %v877 = vpop.permute.xlu0 %876
        %vm879 = vcmask 781824
        %880 = vst.msk [vmem:[#allocation5] sm:$0xf] %vm879, %v877
        %v881 = vpack.c.bf16 %v850, %v850
        %882 = vrot.lane.b32.xlu0 %v358, 32
        %v883 = vpop.permute.xlu0 %882
        %v885 = vmul.bf16 %v881, %v883
        %v887 = vunpack.c.l.b16 %v885
        %v888 = vpack.c.b16 %v887, %v887
        %889 = vrot.lane.b32.xlu0 %v888, 96
        %v890 = vpop.permute.xlu0 %889
        %vm892 = vcmask 1044224
        %893 = vst.msk [vmem:[#allocation5] sm:$0xf] %vm892, %v890
        %v894 = vld [vmem:[#allocation5] sm:$0xf]
        %v895 = vld [vmem:[#allocation11] sm:$0xf]
        %v896 = vld [vmem:[#allocation11 + $0x4] sm:$0xf]
        %v897 = vld [vmem:[#allocation11 + $0x8] sm:$0xf]
        %v898 = vld [vmem:[#allocation11 + $0xc] sm:$0xf]
        %v899 = vld [vmem:[#allocation11 + $0x10] sm:$0xf]
        %v900 = vld [vmem:[#allocation11 + $0x14] sm:$0xf]
        %v901 = vld [vmem:[#allocation11 + $0x18] sm:$0xf]
        %v902 = vld [vmem:[#allocation11 + $0x1c] sm:$0xf]
        %v903 = vld [vmem:[#allocation11 + $0x20] sm:$0xf]
        %v904 = vld [vmem:[#allocation11 + $0x24] sm:$0xf]
        %v905 = vld [vmem:[#allocation11 + $0x28] sm:$0xf]
        %v906 = vld [vmem:[#allocation11 + $0x2c] sm:$0xf]
        %v907 = vld [vmem:[#allocation11 + $0x30] sm:$0xf]
        %v908 = vld [vmem:[#allocation11 + $0x34] sm:$0xf]
        %v909 = vld [vmem:[#allocation11 + $0x38] sm:$0xf]
        %v910 = vld [vmem:[#allocation11 + $0x3c] sm:$0xf]
        %v927 = vunpack.c.l.b16 %v895
        %v928 = vunpack.c.l.b16 %v896
        %v929 = vunpack.c.l.b16 %v897
        %v930 = vunpack.c.l.b16 %v898
        %v931 = vunpack.c.l.b16 %v899
        %v932 = vunpack.c.l.b16 %v900
        %v933 = vunpack.c.l.b16 %v901
        %v934 = vunpack.c.l.b16 %v902
        %v935 = vunpack.c.l.b16 %v903
        %v936 = vunpack.c.l.b16 %v904
        %v937 = vunpack.c.l.b16 %v905
        %v938 = vunpack.c.l.b16 %v906
        %v939 = vunpack.c.l.b16 %v907
        %v940 = vunpack.c.l.b16 %v908
        %v941 = vunpack.c.l.b16 %v909
        %v942 = vunpack.c.l.b16 %v910
        %v943 = vpack.c.b16 %v928, %v927
        %v944 = vpack.c.b16 %v930, %v929
        %v945 = vpack.c.b16 %v932, %v931
        %v946 = vpack.c.b16 %v934, %v933
        %v947 = vpack.c.b16 %v936, %v935
        %v948 = vpack.c.b16 %v938, %v937
        %v949 = vpack.c.b16 %v940, %v939
        %v950 = vpack.c.b16 %v942, %v941
        %959 = vmatprep.subr.bf16.mxu0 0
        %960 = vmatpush1.bf16.msra.mxu0 %v943
        %961 = vmatprep.subr.bf16.mxu0 0
        %962 = vmatpush1.bf16.msra.mxu0 %v944
        %963 = vmatprep.subr.bf16.mxu0 0
        %964 = vmatpush1.bf16.msra.mxu0 %v945
        %965 = vmatprep.subr.bf16.mxu0 0
        %966 = vmatpush1.bf16.msra.mxu0 %v946
        %967 = vmatprep.subr.bf16.mxu0 0
        %968 = vmatpush1.bf16.msra.mxu0 %v947
        %969 = vmatprep.subr.bf16.mxu0 0
        %970 = vmatpush1.bf16.msra.mxu0 %v948
        %971 = vmatprep.subr.bf16.mxu0 0
        %972 = vmatpush1.bf16.msra.mxu0 %v949
        %973 = vmatprep.subr.bf16.mxu0 0
        %974 = vmatpush1.bf16.msra.mxu0 %v950
        %975 = vmatprep.subr.bf16.mxu0 0
        %976 = vmatpush1.bf16.msra.mxu0 0
        %977 = vmatprep.subr.bf16.mxu0 0
        %978 = vmatpush1.bf16.msra.mxu0 0
        %979 = vmatprep.subr.bf16.mxu0 0
        %980 = vmatpush1.bf16.msra.mxu0 0
        %981 = vmatprep.subr.bf16.mxu0 0
        %982 = vmatpush1.bf16.msra.mxu0 0
        %983 = vmatprep.subr.bf16.mxu0 0
        %984 = vmatpush1.bf16.msra.mxu0 0
        %985 = vmatprep.subr.bf16.mxu0 0
        %986 = vmatpush1.bf16.msra.mxu0 0
        %987 = vmatprep.subr.bf16.mxu0 0
        %988 = vmatpush1.bf16.msra.mxu0 0
        %989 = vmatprep.subr.bf16.mxu0 0
        %990 = vmatpush1.bf16.msra.mxu0 0
        %991 = vmatprep.mubr.bf16.mxu0 0
        %992 = vmatmul.mubr.bf16.gmra.mrb[0].mxu0 %v894
        %v993 = vpop.f32.mrb[0].mxu0
        %v994 = vadd.f32 0.0, %v993
        %v995 = vpop.f32.mrb[0].mxu0
        %v996 = vpop.f32.mrb[0].mxu0
        %v997 = vpop.f32.mrb[0].mxu0
        %998 = vdwg.mxu0
        %v999 = vpack.c.bf16 %v994, %v994
        %1000 = vst [vmem:[%s214] sm:$0xf] %v999
        %s1001 = sand.u32 %s97, 1
        %s1002 = scalar_lea.sflag [#allocation8], %s1001
        %s1003 = sand.u32 %s97, 1
        %s1004 = smul.addr %s1003, 4
        %s1005 = scalar_lea.vmem [#allocation12], %s1004
        // Predicated region
        $region45: #{tpu_custom_call.1} parent=31 // pred_check
          %p1006 = pneg %p107
        $region46: #{tpu_custom_call.1} parent=31 // pred_check_branch
          %1008 = sbr.rel (%p1006) target = $region48
        $region47: #{tpu_custom_call.1} parent=31 // pred_region
          %s1010 = ssub.s32 64, 64
          %1011 = vsyncadd %s1002, %s1010
          %s1012 = smul.addr %s21, 64
          %s1013 = scalar_lea.hbm %s3, %s1012
          %s1015 = sshll.u32 %s1005, 4
          %s1016 = int_to_ptr.vmem [resolvable:$true] %s1015
          %1018 = dma.vmem_to_hbm [thread:$0]  %s1016, 64, %s1013, %s1002
        $region48: #{tpu_custom_call.1} parent=31 // pred_fallthru
          _
      $region32: #{tpu_custom_call.1} parent=5 // pred_fallthru
        _
      %p1019 = scmp.le.s32.totalorder 2, %s16
      // Predicated region
      $region49: #{tpu_custom_call.1} parent=5 // pred_check
        %p1020 = pneg %p1019
      $region50: #{tpu_custom_call.1} parent=5 // pred_check_branch
        %1022 = sbr.rel (%p1020) target = $region52
      $region51: #{tpu_custom_call.1} parent=5 // pred_region
        %s1023 = ssub.s32 %s16, 2
        // Predicated region
        $region53: #{tpu_custom_call.1} parent=51 // pred_check
          %p1024 = pneg %p113
        $region54: #{tpu_custom_call.1} parent=51 // pred_check_branch
          %1026 = sbr.rel (%p1024) target = $region56
        $region55: #{tpu_custom_call.1} parent=51 // pred_region
          %s1027 = sand.u32 %s98, 1
          %s1028 = scalar_lea.sflag [#allocation8], %s1027
          %s1029 = sand.u32 %s98, 1
          %s1030 = smul.addr %s1029, 4
          %s1031 = scalar_lea.vmem [#allocation12], %s1030
          %1032 = dma.done %s1028, 64
        $region56: #{tpu_custom_call.1} parent=51 // pred_fallthru
          _
      $region52: #{tpu_custom_call.1} parent=5 // pred_fallthru
        _
    $region6: #{tpu_custom_call.1} parent=1 // loop_footer
      %s20 = sadd.s32 1, %s16
    $region7: #{tpu_custom_call.1} parent=1 // loop_footer_branch
      %15 = sbr.rel target = $region3
    $region8: #{tpu_custom_call.1} parent=1 // loop_exit
      _
    %1033 = vsyncpa [#allocation7], 1
    %s1034 = scalar_lea.sflag [#allocation7], 1
    %1035 = vsyncpa %s1034, 1
    %1036 = vsyncpa [#allocation10], 1
    %1037 = vsyncpa [#allocation8], 1
    %s1038 = scalar_lea.sflag [#allocation8], 1
    %1039 = vsyncpa %s1038, 1

</llo_original>
